<compile_context>
chip_gen: v5e
topology: v5e:2x2
jax: 0.10.0
libtpu: 0.0.40
codegen_flags: <defaults>
</compile_context>

<pallas_src>
import jax
import jax.numpy as jnp
from jax.experimental import pallas as pl
from jax.experimental.pallas import tpu as pltpu

R = 5  # upscale factor of nn.PixelShuffle(5)


def _interleave_matrix(wt, dtype):
    """S[r2*wt + w, 5*w + r2] = 1 — lane-permutation matrix for one W tile."""
    n = R * wt
    rows = jnp.arange(n, dtype=jnp.int32)
    dst = R * (rows % wt) + rows // wt
    cols = jnp.arange(n, dtype=jnp.int32)
    return (cols[None, :] == dst[:, None]).astype(dtype)


def _exact_dot(xa, s):
    """xa @ s, exact when s is a 0/1 permutation matrix (bf16 MXU passes)."""
    if xa.dtype == jnp.float32:
        # Exact 3-way bf16 split: hi + mid + lo == xa bit-exactly, each piece
        # is bf16-representable, so three plain bf16 MXU passes (f32 accum)
        # reconstruct the f32 result exactly.
        hi = xa.astype(jnp.bfloat16)
        r = xa - hi.astype(jnp.float32)
        mid = r.astype(jnp.bfloat16)
        lo = (r - mid.astype(jnp.float32)).astype(jnp.bfloat16)
        return (jnp.dot(hi, s, preferred_element_type=jnp.float32)
                + jnp.dot(mid, s, preferred_element_type=jnp.float32)
                + jnp.dot(lo, s, preferred_element_type=jnp.float32))
    # bf16 input: operands are exact on the MXU, f32 accumulation.
    return jnp.dot(xa, s, preferred_element_type=jnp.float32)


def _make_kernel(cb, ht, W, Wt, n_full, Wrem):
    def do_subtile(x_ref, o_ref, xall_ref, s_mat, w0, wt):
        # 1) assemble X_all[(c*5 + r1)*ht + h, r2*wt + w] = x[c, 5r1+r2, h, w0+w]
        #    (pure contiguous block copies into VMEM scratch, no math)
        for c in range(cb):
            for r1 in range(R):
                row0 = (c * R + r1) * ht
                for r2 in range(R):
                    xall_ref[row0:row0 + ht, r2 * wt:(r2 + 1) * wt] = (
                        x_ref[0, c, r1 * R + r2, :, w0:w0 + wt])
        # 2) one batched lane-permute matmul for the whole (c, r1, h) range
        y = _exact_dot(xall_ref[:, :R * wt], s_mat).astype(o_ref.dtype)
        # 3) dense, lane-contiguous stores straight into the output view
        #    out_view[.., h, r1*5W + 5*w0 + j] = y[.., j]
        for c in range(cb):
            for r1 in range(R):
                row0 = (c * R + r1) * ht
                col0 = r1 * (R * W) + R * w0
                o_ref[0, c, :, col0:col0 + R * wt] = y[row0:row0 + ht, :]

    if Wrem > 0:
        def kernel(x_ref, s_ref, srem_ref, o_ref, xall_ref):
            for t in range(n_full):
                do_subtile(x_ref, o_ref, xall_ref, s_ref[...], t * Wt, Wt)
            do_subtile(x_ref, o_ref, xall_ref, srem_ref[...], n_full * Wt, Wrem)
    else:
        def kernel(x_ref, s_ref, o_ref, xall_ref):
            for t in range(n_full):
                do_subtile(x_ref, o_ref, xall_ref, s_ref[...], t * Wt, Wt)
    return kernel


def pixel_shuffle5(x, *, target_block_bytes=None):
    """PixelShuffle(5): (N, C*25, H, W) -> (N, C, 5H, 5W)."""
    N, C_in, H, W = x.shape
    assert C_in % (R * R) == 0, "input channels must be divisible by 25"
    C_out = C_in // (R * R)
    if jnp.dtype(x.dtype) not in (jnp.dtype(jnp.float32), jnp.dtype(jnp.bfloat16)):
        # TODO(synk): other dtypes (fp16/int8) need their own exact MXU handling.
        raise NotImplementedError(f"unsupported dtype {x.dtype}")
    isz = jnp.dtype(x.dtype).itemsize
    sub = 8 if isz == 4 else 16               # sublane multiple (f32 / bf16)

    # --- generation-aware sizing: v7x has 64 MiB VMEM, v5e/v6e have 128 MiB ---
    try:
        phys_vmem = int(pltpu.get_tpu_info().vmem_capacity_bytes)
    except Exception:
        phys_vmem = 64 * 2**20                # assume the smallest (v7x)
    if target_block_bytes is None:
        target_block_bytes = (6 * 2**20 if phys_vmem >= 96 * 2**20 else 3 * 2**20)

    # --- H tiling: multiple-of-`sub` tiles; cdiv grid covers awkward H ---
    row_bytes = R * R * W * isz               # one h-row worth of one out channel
    if H * row_bytes <= target_block_bytes or H <= sub:
        ht = H
        # TODO(synk): extreme aspect ratios (tiny H, enormous W) are not block-
        # tiled along W at the HBM level; only the in-kernel W subtiling applies.
    else:
        ht = 0
        cand = (H // sub) * sub
        while cand >= sub:                    # largest divisor within budget
            if H % cand == 0 and cand * row_bytes <= target_block_bytes:
                ht = cand
                break
            cand -= sub
        if ht == 0:                           # awkward H: masked edge block
            ht = max(sub, min((H // sub) * sub,
                              max(sub, (target_block_bytes // row_bytes)
                                  // sub * sub)))
    n_hblk = pl.cdiv(H, ht)

    # --- W subtiling (inside the kernel): bounds S and the MXU flops/byte ---
    wt_cap = 48 if isz == 4 else 96           # keeps v5e under the HBM roofline
    if W <= wt_cap:
        Wt = W
    else:
        Wt = 0
        for cand in range(wt_cap, 15, -1):
            if W % cand == 0:
                Wt = cand
                break
        if Wt == 0:
            Wt = wt_cap                       # remainder handled with a second S
    n_full, Wrem = W // Wt, W % Wt
    n_sub = n_full + (1 if Wrem > 0 else 0)

    # --- channel-block coarsening: keeps the per-step matmul fat ---
    blk1 = R * R * ht * W * isz               # bytes of one output channel block
    cb = 1
    for cand in range(min(C_out, 8), 0, -1):
        if (C_out % cand == 0 and cand * blk1 <= target_block_bytes
                and cand * R * R * n_sub <= 1200):   # bound unrolled trace size
            cb = cand
            break
    # guarantee >=2 grid steps on a parallel axis so a v7x megacore can split
    if N * (C_out // cb) * n_hblk < 2 and C_out >= 2:
        for cand in range(C_out // 2, 0, -1):
            if C_out % cand == 0:
                cb = cand
                break
    n_cblk = C_out // cb

    # --- constant permutation matrices, DMA'd once and kept resident ---
    s_dtype = jnp.bfloat16 if isz == 4 else x.dtype
    operands = [x.reshape(N, C_out, R * R, H, W), _interleave_matrix(Wt, s_dtype)]
    in_specs = [
        pl.BlockSpec((1, cb, R * R, ht, W), lambda n, ci, hi: (n, ci, 0, hi, 0)),
        pl.BlockSpec((R * Wt, R * Wt), lambda n, ci, hi: (0, 0)),
    ]
    if Wrem > 0:
        operands.append(_interleave_matrix(Wrem, s_dtype))
        in_specs.append(pl.BlockSpec((R * Wrem, R * Wrem),
                                     lambda n, ci, hi: (0, 0)))

    # --- VMEM budget (double-buffered blocks + resident S + scratch + temps) ---
    io_block = cb * R * R * ht * W * isz
    s_bytes = (R * Wt) ** 2 * jnp.dtype(s_dtype).itemsize
    if Wrem > 0:
        s_bytes += (R * Wrem) ** 2 * jnp.dtype(s_dtype).itemsize
    xall_bytes = cb * R * ht * R * Wt * isz
    temp_bytes = 5 * cb * R * ht * R * Wt * 4      # split pieces + f32 partials
    vmem_needed = 4 * io_block + 2 * s_bytes + xall_bytes + temp_bytes
    vmem_limit = int(min(max(phys_vmem - 16 * 2**20, 32 * 2**20),
                         max(32 * 2**20, vmem_needed + 8 * 2**20)))

    out_view = pl.pallas_call(
        _make_kernel(cb, ht, W, Wt, n_full, Wrem),
        # lane-dense output view (N, C, H, 25W); reshaped for free below
        out_shape=jax.ShapeDtypeStruct((N, C_out, H, R * R * W), x.dtype),
        grid_spec=pltpu.PrefetchScalarGridSpec(
            num_scalar_prefetch=0,
            grid=(N, n_cblk, n_hblk),
            in_specs=in_specs,
            out_specs=pl.BlockSpec((1, cb, ht, R * R * W),
                                   lambda n, ci, hi: (n, ci, hi, 0)),
            scratch_shapes=[pltpu.VMEM((cb * R * ht, R * Wt), x.dtype)],
        ),
        compiler_params=pltpu.CompilerParams(
            dimension_semantics=("parallel", "parallel", "parallel"),
            vmem_limit_bytes=vmem_limit,
        ),
    )(*operands)

    # (N, C, H, 5, 5W) row grouping is contiguous -> free reshape to (N, C, 5H, 5W)
    return out_view.reshape(N, C_out, R * H, R * W)


def _pixel_shuffle5_ref(x):
    # Pure-JAX reference (same math as torch.nn.PixelShuffle(5)).
    N, C_in, H, W = x.shape
    C_out = C_in // (R * R)
    y = x.reshape(N, C_out, R, R, H, W)
    y = jnp.transpose(y, (0, 1, 4, 2, 5, 3))  # (N, C_out, H, R, W, R)
    return y.reshape(N, C_out, H * R, W * R)


if __name__ == "__main__":
    key = jax.random.PRNGKey(0)
    # Small shape consistent with PixelShuffle(5): C_in = 2 * 25 = 50.
    N, C_in, H, W = 2, 50, 16, 16
    x = jax.random.normal(key, (N, C_in, H, W), dtype=jnp.float32)

    out = jax.block_until_ready(pixel_shuffle5(x))

    ref = _pixel_shuffle5_ref(x)
    assert out.shape == (N, C_in // 25, H * R, W * R), out.shape
    assert jnp.allclose(out, ref), float(jnp.max(jnp.abs(out - ref)))
    print("KERNEL_OK")
</pallas_src>

<mosaic_0001>
module attributes {stable_mosaic.version = 11 : i64} {
  func.func @kernel(%arg0: i32, %arg1: i32, %arg2: i32, %arg3: memref<1x2x25x16x16xf32, #tpu.memory_space<vmem>>, %arg4: memref<80x80xbf16, #tpu.memory_space<vmem>>, %arg5: memref<1x2x16x400xf32, #tpu.memory_space<vmem>>, %arg6: memref<160x80xf32, #tpu.memory_space<vmem>>) attributes {dimension_semantics = [#tpu.dimension_semantics<parallel>, #tpu.dimension_semantics<parallel>, #tpu.dimension_semantics<parallel>], iteration_bounds = array<i64: 2, 1, 1>, scalar_prefetch = 0 : i64, scratch_operands = 1 : i64, tpu.core_type = #tpu.core_type<tc>, window_params = [{transform_indices = @transform_0, window_bounds = array<i64: 1, 2, 25, 16, 16>}, {pipeline_mode = #tpu.pipeline_mode<synchronous>, transform_indices = @transform_1, window_bounds = array<i64: 80, 80>}, {transform_indices = @transform_2, window_bounds = array<i64: 1, 2, 16, 400>}]} {
    %c0 = arith.constant 0 : index
    %c0_0 = arith.constant 0 : index
    %0 = vector.load %arg4[%c0, %c0_0] : memref<80x80xbf16, #tpu.memory_space<vmem>>, vector<80x80xbf16>
    %c0_1 = arith.constant 0 : index
    %c0_2 = arith.constant 0 : index
    %c0_3 = arith.constant 0 : index
    %c0_4 = arith.constant 0 : index
    %c0_5 = arith.constant 0 : index
    %1 = vector.load %arg3[%c0_1, %c0_2, %c0_3, %c0_4, %c0_5] : memref<1x2x25x16x16xf32, #tpu.memory_space<vmem>>, vector<1x1x1x16x16xf32>
    %2 = vector.shape_cast %1 : vector<1x1x1x16x16xf32> to vector<16x16xf32>
    %c0_6 = arith.constant 0 : index
    %c0_7 = arith.constant 0 : index
    %3 = vector.load %arg6[%c0_6, %c0_7] : memref<160x80xf32, #tpu.memory_space<vmem>>, vector<16x16xf32>
    tpu.vector_store %arg6[%c0_6, %c0_7], %2 {strides = array<i32>} : memref<160x80xf32, #tpu.memory_space<vmem>>, vector<16x16xf32>,
    %c0_8 = arith.constant 0 : index
    %c0_9 = arith.constant 0 : index
    %c1 = arith.constant 1 : index
    %c0_10 = arith.constant 0 : index
    %c0_11 = arith.constant 0 : index
    %4 = vector.load %arg3[%c0_8, %c0_9, %c1, %c0_10, %c0_11] : memref<1x2x25x16x16xf32, #tpu.memory_space<vmem>>, vector<1x1x1x16x16xf32>
    %5 = vector.shape_cast %4 : vector<1x1x1x16x16xf32> to vector<16x16xf32>
    %c0_12 = arith.constant 0 : index
    %c16 = arith.constant 16 : index
    %6 = vector.load %arg6[%c0_12, %c16] : memref<160x80xf32, #tpu.memory_space<vmem>>, vector<16x16xf32>
    tpu.vector_store %arg6[%c0_12, %c16], %5 {strides = array<i32>} : memref<160x80xf32, #tpu.memory_space<vmem>>, vector<16x16xf32>,
    %c0_13 = arith.constant 0 : index
    %c0_14 = arith.constant 0 : index
    %c2 = arith.constant 2 : index
    %c0_15 = arith.constant 0 : index
    %c0_16 = arith.constant 0 : index
    %7 = vector.load %arg3[%c0_13, %c0_14, %c2, %c0_15, %c0_16] : memref<1x2x25x16x16xf32, #tpu.memory_space<vmem>>, vector<1x1x1x16x16xf32>
    %8 = vector.shape_cast %7 : vector<1x1x1x16x16xf32> to vector<16x16xf32>
    %c0_17 = arith.constant 0 : index
    %c32 = arith.constant 32 : index
    %9 = vector.load %arg6[%c0_17, %c32] : memref<160x80xf32, #tpu.memory_space<vmem>>, vector<16x16xf32>
    tpu.vector_store %arg6[%c0_17, %c32], %8 {strides = array<i32>} : memref<160x80xf32, #tpu.memory_space<vmem>>, vector<16x16xf32>,
    %c0_18 = arith.constant 0 : index
    %c0_19 = arith.constant 0 : index
    %c3 = arith.constant 3 : index
    %c0_20 = arith.constant 0 : index
    %c0_21 = arith.constant 0 : index
    %10 = vector.load %arg3[%c0_18, %c0_19, %c3, %c0_20, %c0_21] : memref<1x2x25x16x16xf32, #tpu.memory_space<vmem>>, vector<1x1x1x16x16xf32>
    %11 = vector.shape_cast %10 : vector<1x1x1x16x16xf32> to vector<16x16xf32>
    %c0_22 = arith.constant 0 : index
    %c48 = arith.constant 48 : index
    %12 = vector.load %arg6[%c0_22, %c48] : memref<160x80xf32, #tpu.memory_space<vmem>>, vector<16x16xf32>
    tpu.vector_store %arg6[%c0_22, %c48], %11 {strides = array<i32>} : memref<160x80xf32, #tpu.memory_space<vmem>>, vector<16x16xf32>,
    %c0_23 = arith.constant 0 : index
    %c0_24 = arith.constant 0 : index
    %c4 = arith.constant 4 : index
    %c0_25 = arith.constant 0 : index
    %c0_26 = arith.constant 0 : index
    %13 = vector.load %arg3[%c0_23, %c0_24, %c4, %c0_25, %c0_26] : memref<1x2x25x16x16xf32, #tpu.memory_space<vmem>>, vector<1x1x1x16x16xf32>
    %14 = vector.shape_cast %13 : vector<1x1x1x16x16xf32> to vector<16x16xf32>
    %c0_27 = arith.constant 0 : index
    %c64 = arith.constant 64 : index
    %15 = vector.load %arg6[%c0_27, %c64] : memref<160x80xf32, #tpu.memory_space<vmem>>, vector<16x16xf32>
    tpu.vector_store %arg6[%c0_27, %c64], %14 {strides = array<i32>} : memref<160x80xf32, #tpu.memory_space<vmem>>, vector<16x16xf32>,
    %c0_28 = arith.constant 0 : index
    %c0_29 = arith.constant 0 : index
    %c5 = arith.constant 5 : index
    %c0_30 = arith.constant 0 : index
    %c0_31 = arith.constant 0 : index
    %16 = vector.load %arg3[%c0_28, %c0_29, %c5, %c0_30, %c0_31] : memref<1x2x25x16x16xf32, #tpu.memory_space<vmem>>, vector<1x1x1x16x16xf32>
    %17 = vector.shape_cast %16 : vector<1x1x1x16x16xf32> to vector<16x16xf32>
    %c16_32 = arith.constant 16 : index
    %c0_33 = arith.constant 0 : index
    %18 = vector.load %arg6[%c16_32, %c0_33] : memref<160x80xf32, #tpu.memory_space<vmem>>, vector<16x16xf32>
    tpu.vector_store %arg6[%c16_32, %c0_33], %17 {strides = array<i32>} : memref<160x80xf32, #tpu.memory_space<vmem>>, vector<16x16xf32>,
    %c0_34 = arith.constant 0 : index
    %c0_35 = arith.constant 0 : index
    %c6 = arith.constant 6 : index
    %c0_36 = arith.constant 0 : index
    %c0_37 = arith.constant 0 : index
    %19 = vector.load %arg3[%c0_34, %c0_35, %c6, %c0_36, %c0_37] : memref<1x2x25x16x16xf32, #tpu.memory_space<vmem>>, vector<1x1x1x16x16xf32>
    %20 = vector.shape_cast %19 : vector<1x1x1x16x16xf32> to vector<16x16xf32>
    %c16_38 = arith.constant 16 : index
    %c16_39 = arith.constant 16 : index
    %21 = vector.load %arg6[%c16_38, %c16_39] : memref<160x80xf32, #tpu.memory_space<vmem>>, vector<16x16xf32>
    tpu.vector_store %arg6[%c16_38, %c16_39], %20 {strides = array<i32>} : memref<160x80xf32, #tpu.memory_space<vmem>>, vector<16x16xf32>,
    %c0_40 = arith.constant 0 : index
    %c0_41 = arith.constant 0 : index
    %c7 = arith.constant 7 : index
    %c0_42 = arith.constant 0 : index
    %c0_43 = arith.constant 0 : index
    %22 = vector.load %arg3[%c0_40, %c0_41, %c7, %c0_42, %c0_43] : memref<1x2x25x16x16xf32, #tpu.memory_space<vmem>>, vector<1x1x1x16x16xf32>
    %23 = vector.shape_cast %22 : vector<1x1x1x16x16xf32> to vector<16x16xf32>
    %c16_44 = arith.constant 16 : index
    %c32_45 = arith.constant 32 : index
    %24 = vector.load %arg6[%c16_44, %c32_45] : memref<160x80xf32, #tpu.memory_space<vmem>>, vector<16x16xf32>
    tpu.vector_store %arg6[%c16_44, %c32_45], %23 {strides = array<i32>} : memref<160x80xf32, #tpu.memory_space<vmem>>, vector<16x16xf32>,
    %c0_46 = arith.constant 0 : index
    %c0_47 = arith.constant 0 : index
    %c8 = arith.constant 8 : index
    %c0_48 = arith.constant 0 : index
    %c0_49 = arith.constant 0 : index
    %25 = vector.load %arg3[%c0_46, %c0_47, %c8, %c0_48, %c0_49] : memref<1x2x25x16x16xf32, #tpu.memory_space<vmem>>, vector<1x1x1x16x16xf32>
    %26 = vector.shape_cast %25 : vector<1x1x1x16x16xf32> to vector<16x16xf32>
    %c16_50 = arith.constant 16 : index
    %c48_51 = arith.constant 48 : index
    %27 = vector.load %arg6[%c16_50, %c48_51] : memref<160x80xf32, #tpu.memory_space<vmem>>, vector<16x16xf32>
    tpu.vector_store %arg6[%c16_50, %c48_51], %26 {strides = array<i32>} : memref<160x80xf32, #tpu.memory_space<vmem>>, vector<16x16xf32>,
    %c0_52 = arith.constant 0 : index
    %c0_53 = arith.constant 0 : index
    %c9 = arith.constant 9 : index
    %c0_54 = arith.constant 0 : index
    %c0_55 = arith.constant 0 : index
    %28 = vector.load %arg3[%c0_52, %c0_53, %c9, %c0_54, %c0_55] : memref<1x2x25x16x16xf32, #tpu.memory_space<vmem>>, vector<1x1x1x16x16xf32>
    %29 = vector.shape_cast %28 : vector<1x1x1x16x16xf32> to vector<16x16xf32>
    %c16_56 = arith.constant 16 : index
    %c64_57 = arith.constant 64 : index
    %30 = vector.load %arg6[%c16_56, %c64_57] : memref<160x80xf32, #tpu.memory_space<vmem>>, vector<16x16xf32>
    tpu.vector_store %arg6[%c16_56, %c64_57], %29 {strides = array<i32>} : memref<160x80xf32, #tpu.memory_space<vmem>>, vector<16x16xf32>,
    %c0_58 = arith.constant 0 : index
    %c0_59 = arith.constant 0 : index
    %c10 = arith.constant 10 : index
    %c0_60 = arith.constant 0 : index
    %c0_61 = arith.constant 0 : index
    %31 = vector.load %arg3[%c0_58, %c0_59, %c10, %c0_60, %c0_61] : memref<1x2x25x16x16xf32, #tpu.memory_space<vmem>>, vector<1x1x1x16x16xf32>
    %32 = vector.shape_cast %31 : vector<1x1x1x16x16xf32> to vector<16x16xf32>
    %c32_62 = arith.constant 32 : index
    %c0_63 = arith.constant 0 : index
    %33 = vector.load %arg6[%c32_62, %c0_63] : memref<160x80xf32, #tpu.memory_space<vmem>>, vector<16x16xf32>
    tpu.vector_store %arg6[%c32_62, %c0_63], %32 {strides = array<i32>} : memref<160x80xf32, #tpu.memory_space<vmem>>, vector<16x16xf32>,
    %c0_64 = arith.constant 0 : index
    %c0_65 = arith.constant 0 : index
    %c11 = arith.constant 11 : index
    %c0_66 = arith.constant 0 : index
    %c0_67 = arith.constant 0 : index
    %34 = vector.load %arg3[%c0_64, %c0_65, %c11, %c0_66, %c0_67] : memref<1x2x25x16x16xf32, #tpu.memory_space<vmem>>, vector<1x1x1x16x16xf32>
    %35 = vector.shape_cast %34 : vector<1x1x1x16x16xf32> to vector<16x16xf32>
    %c32_68 = arith.constant 32 : index
    %c16_69 = arith.constant 16 : index
    %36 = vector.load %arg6[%c32_68, %c16_69] : memref<160x80xf32, #tpu.memory_space<vmem>>, vector<16x16xf32>
    tpu.vector_store %arg6[%c32_68, %c16_69], %35 {strides = array<i32>} : memref<160x80xf32, #tpu.memory_space<vmem>>, vector<16x16xf32>,
    %c0_70 = arith.constant 0 : index
    %c0_71 = arith.constant 0 : index
    %c12 = arith.constant 12 : index
    %c0_72 = arith.constant 0 : index
    %c0_73 = arith.constant 0 : index
    %37 = vector.load %arg3[%c0_70, %c0_71, %c12, %c0_72, %c0_73] : memref<1x2x25x16x16xf32, #tpu.memory_space<vmem>>, vector<1x1x1x16x16xf32>
    %38 = vector.shape_cast %37 : vector<1x1x1x16x16xf32> to vector<16x16xf32>
    %c32_74 = arith.constant 32 : index
    %c32_75 = arith.constant 32 : index
    %39 = vector.load %arg6[%c32_74, %c32_75] : memref<160x80xf32, #tpu.memory_space<vmem>>, vector<16x16xf32>
    tpu.vector_store %arg6[%c32_74, %c32_75], %38 {strides = array<i32>} : memref<160x80xf32, #tpu.memory_space<vmem>>, vector<16x16xf32>,
    %c0_76 = arith.constant 0 : index
    %c0_77 = arith.constant 0 : index
    %c13 = arith.constant 13 : index
    %c0_78 = arith.constant 0 : index
    %c0_79 = arith.constant 0 : index
    %40 = vector.load %arg3[%c0_76, %c0_77, %c13, %c0_78, %c0_79] : memref<1x2x25x16x16xf32, #tpu.memory_space<vmem>>, vector<1x1x1x16x16xf32>
    %41 = vector.shape_cast %40 : vector<1x1x1x16x16xf32> to vector<16x16xf32>
    %c32_80 = arith.constant 32 : index
    %c48_81 = arith.constant 48 : index
    %42 = vector.load %arg6[%c32_80, %c48_81] : memref<160x80xf32, #tpu.memory_space<vmem>>, vector<16x16xf32>
    tpu.vector_store %arg6[%c32_80, %c48_81], %41 {strides = array<i32>} : memref<160x80xf32, #tpu.memory_space<vmem>>, vector<16x16xf32>,
    %c0_82 = arith.constant 0 : index
    %c0_83 = arith.constant 0 : index
    %c14 = arith.constant 14 : index
    %c0_84 = arith.constant 0 : index
    %c0_85 = arith.constant 0 : index
    %43 = vector.load %arg3[%c0_82, %c0_83, %c14, %c0_84, %c0_85] : memref<1x2x25x16x16xf32, #tpu.memory_space<vmem>>, vector<1x1x1x16x16xf32>
    %44 = vector.shape_cast %43 : vector<1x1x1x16x16xf32> to vector<16x16xf32>
    %c32_86 = arith.constant 32 : index
    %c64_87 = arith.constant 64 : index
    %45 = vector.load %arg6[%c32_86, %c64_87] : memref<160x80xf32, #tpu.memory_space<vmem>>, vector<16x16xf32>
    tpu.vector_store %arg6[%c32_86, %c64_87], %44 {strides = array<i32>} : memref<160x80xf32, #tpu.memory_space<vmem>>, vector<16x16xf32>,
    %c0_88 = arith.constant 0 : index
    %c0_89 = arith.constant 0 : index
    %c15 = arith.constant 15 : index
    %c0_90 = arith.constant 0 : index
    %c0_91 = arith.constant 0 : index
    %46 = vector.load %arg3[%c0_88, %c0_89, %c15, %c0_90, %c0_91] : memref<1x2x25x16x16xf32, #tpu.memory_space<vmem>>, vector<1x1x1x16x16xf32>
    %47 = vector.shape_cast %46 : vector<1x1x1x16x16xf32> to vector<16x16xf32>
    %c48_92 = arith.constant 48 : index
    %c0_93 = arith.constant 0 : index
    %48 = vector.load %arg6[%c48_92, %c0_93] : memref<160x80xf32, #tpu.memory_space<vmem>>, vector<16x16xf32>
    tpu.vector_store %arg6[%c48_92, %c0_93], %47 {strides = array<i32>} : memref<160x80xf32, #tpu.memory_space<vmem>>, vector<16x16xf32>,
    %c0_94 = arith.constant 0 : index
    %c0_95 = arith.constant 0 : index
    %c16_96 = arith.constant 16 : index
    %c0_97 = arith.constant 0 : index
    %c0_98 = arith.constant 0 : index
    %49 = vector.load %arg3[%c0_94, %c0_95, %c16_96, %c0_97, %c0_98] : memref<1x2x25x16x16xf32, #tpu.memory_space<vmem>>, vector<1x1x1x16x16xf32>
    %50 = vector.shape_cast %49 : vector<1x1x1x16x16xf32> to vector<16x16xf32>
    %c48_99 = arith.constant 48 : index
    %c16_100 = arith.constant 16 : index
    %51 = vector.load %arg6[%c48_99, %c16_100] : memref<160x80xf32, #tpu.memory_space<vmem>>, vector<16x16xf32>
    tpu.vector_store %arg6[%c48_99, %c16_100], %50 {strides = array<i32>} : memref<160x80xf32, #tpu.memory_space<vmem>>, vector<16x16xf32>,
    %c0_101 = arith.constant 0 : index
    %c0_102 = arith.constant 0 : index
    %c17 = arith.constant 17 : index
    %c0_103 = arith.constant 0 : index
    %c0_104 = arith.constant 0 : index
    %52 = vector.load %arg3[%c0_101, %c0_102, %c17, %c0_103, %c0_104] : memref<1x2x25x16x16xf32, #tpu.memory_space<vmem>>, vector<1x1x1x16x16xf32>
    %53 = vector.shape_cast %52 : vector<1x1x1x16x16xf32> to vector<16x16xf32>
    %c48_105 = arith.constant 48 : index
    %c32_106 = arith.constant 32 : index
    %54 = vector.load %arg6[%c48_105, %c32_106] : memref<160x80xf32, #tpu.memory_space<vmem>>, vector<16x16xf32>
    tpu.vector_store %arg6[%c48_105, %c32_106], %53 {strides = array<i32>} : memref<160x80xf32, #tpu.memory_space<vmem>>, vector<16x16xf32>,
    %c0_107 = arith.constant 0 : index
    %c0_108 = arith.constant 0 : index
    %c18 = arith.constant 18 : index
    %c0_109 = arith.constant 0 : index
    %c0_110 = arith.constant 0 : index
    %55 = vector.load %arg3[%c0_107, %c0_108, %c18, %c0_109, %c0_110] : memref<1x2x25x16x16xf32, #tpu.memory_space<vmem>>, vector<1x1x1x16x16xf32>
    %56 = vector.shape_cast %55 : vector<1x1x1x16x16xf32> to vector<16x16xf32>
    %c48_111 = arith.constant 48 : index
    %c48_112 = arith.constant 48 : index
    %57 = vector.load %arg6[%c48_111, %c48_112] : memref<160x80xf32, #tpu.memory_space<vmem>>, vector<16x16xf32>
    tpu.vector_store %arg6[%c48_111, %c48_112], %56 {strides = array<i32>} : memref<160x80xf32, #tpu.memory_space<vmem>>, vector<16x16xf32>,
    %c0_113 = arith.constant 0 : index
    %c0_114 = arith.constant 0 : index
    %c19 = arith.constant 19 : index
    %c0_115 = arith.constant 0 : index
    %c0_116 = arith.constant 0 : index
    %58 = vector.load %arg3[%c0_113, %c0_114, %c19, %c0_115, %c0_116] : memref<1x2x25x16x16xf32, #tpu.memory_space<vmem>>, vector<1x1x1x16x16xf32>
    %59 = vector.shape_cast %58 : vector<1x1x1x16x16xf32> to vector<16x16xf32>
    %c48_117 = arith.constant 48 : index
    %c64_118 = arith.constant 64 : index
    %60 = vector.load %arg6[%c48_117, %c64_118] : memref<160x80xf32, #tpu.memory_space<vmem>>, vector<16x16xf32>
    tpu.vector_store %arg6[%c48_117, %c64_118], %59 {strides = array<i32>} : memref<160x80xf32, #tpu.memory_space<vmem>>, vector<16x16xf32>,
    %c0_119 = arith.constant 0 : index
    %c0_120 = arith.constant 0 : index
    %c20 = arith.constant 20 : index
    %c0_121 = arith.constant 0 : index
    %c0_122 = arith.constant 0 : index
    %61 = vector.load %arg3[%c0_119, %c0_120, %c20, %c0_121, %c0_122] : memref<1x2x25x16x16xf32, #tpu.memory_space<vmem>>, vector<1x1x1x16x16xf32>
    %62 = vector.shape_cast %61 : vector<1x1x1x16x16xf32> to vector<16x16xf32>
    %c64_123 = arith.constant 64 : index
    %c0_124 = arith.constant 0 : index
    %63 = vector.load %arg6[%c64_123, %c0_124] : memref<160x80xf32, #tpu.memory_space<vmem>>, vector<16x16xf32>
    tpu.vector_store %arg6[%c64_123, %c0_124], %62 {strides = array<i32>} : memref<160x80xf32, #tpu.memory_space<vmem>>, vector<16x16xf32>,
    %c0_125 = arith.constant 0 : index
    %c0_126 = arith.constant 0 : index
    %c21 = arith.constant 21 : index
    %c0_127 = arith.constant 0 : index
    %c0_128 = arith.constant 0 : index
    %64 = vector.load %arg3[%c0_125, %c0_126, %c21, %c0_127, %c0_128] : memref<1x2x25x16x16xf32, #tpu.memory_space<vmem>>, vector<1x1x1x16x16xf32>
    %65 = vector.shape_cast %64 : vector<1x1x1x16x16xf32> to vector<16x16xf32>
    %c64_129 = arith.constant 64 : index
    %c16_130 = arith.constant 16 : index
    %66 = vector.load %arg6[%c64_129, %c16_130] : memref<160x80xf32, #tpu.memory_space<vmem>>, vector<16x16xf32>
    tpu.vector_store %arg6[%c64_129, %c16_130], %65 {strides = array<i32>} : memref<160x80xf32, #tpu.memory_space<vmem>>, vector<16x16xf32>,
    %c0_131 = arith.constant 0 : index
    %c0_132 = arith.constant 0 : index
    %c22 = arith.constant 22 : index
    %c0_133 = arith.constant 0 : index
    %c0_134 = arith.constant 0 : index
    %67 = vector.load %arg3[%c0_131, %c0_132, %c22, %c0_133, %c0_134] : memref<1x2x25x16x16xf32, #tpu.memory_space<vmem>>, vector<1x1x1x16x16xf32>
    %68 = vector.shape_cast %67 : vector<1x1x1x16x16xf32> to vector<16x16xf32>
    %c64_135 = arith.constant 64 : index
    %c32_136 = arith.constant 32 : index
    %69 = vector.load %arg6[%c64_135, %c32_136] : memref<160x80xf32, #tpu.memory_space<vmem>>, vector<16x16xf32>
    tpu.vector_store %arg6[%c64_135, %c32_136], %68 {strides = array<i32>} : memref<160x80xf32, #tpu.memory_space<vmem>>, vector<16x16xf32>,
    %c0_137 = arith.constant 0 : index
    %c0_138 = arith.constant 0 : index
    %c23 = arith.constant 23 : index
    %c0_139 = arith.constant 0 : index
    %c0_140 = arith.constant 0 : index
    %70 = vector.load %arg3[%c0_137, %c0_138, %c23, %c0_139, %c0_140] : memref<1x2x25x16x16xf32, #tpu.memory_space<vmem>>, vector<1x1x1x16x16xf32>
    %71 = vector.shape_cast %70 : vector<1x1x1x16x16xf32> to vector<16x16xf32>
    %c64_141 = arith.constant 64 : index
    %c48_142 = arith.constant 48 : index
    %72 = vector.load %arg6[%c64_141, %c48_142] : memref<160x80xf32, #tpu.memory_space<vmem>>, vector<16x16xf32>
    tpu.vector_store %arg6[%c64_141, %c48_142], %71 {strides = array<i32>} : memref<160x80xf32, #tpu.memory_space<vmem>>, vector<16x16xf32>,
    %c0_143 = arith.constant 0 : index
    %c0_144 = arith.constant 0 : index
    %c24 = arith.constant 24 : index
    %c0_145 = arith.constant 0 : index
    %c0_146 = arith.constant 0 : index
    %73 = vector.load %arg3[%c0_143, %c0_144, %c24, %c0_145, %c0_146] : memref<1x2x25x16x16xf32, #tpu.memory_space<vmem>>, vector<1x1x1x16x16xf32>
    %74 = vector.shape_cast %73 : vector<1x1x1x16x16xf32> to vector<16x16xf32>
    %c64_147 = arith.constant 64 : index
    %c64_148 = arith.constant 64 : index
    %75 = vector.load %arg6[%c64_147, %c64_148] : memref<160x80xf32, #tpu.memory_space<vmem>>, vector<16x16xf32>
    tpu.vector_store %arg6[%c64_147, %c64_148], %74 {strides = array<i32>} : memref<160x80xf32, #tpu.memory_space<vmem>>, vector<16x16xf32>,
    %c0_149 = arith.constant 0 : index
    %c1_150 = arith.constant 1 : index
    %c0_151 = arith.constant 0 : index
    %c0_152 = arith.constant 0 : index
    %c0_153 = arith.constant 0 : index
    %76 = vector.load %arg3[%c0_149, %c1_150, %c0_151, %c0_152, %c0_153] : memref<1x2x25x16x16xf32, #tpu.memory_space<vmem>>, vector<1x1x1x16x16xf32>
    %77 = vector.shape_cast %76 : vector<1x1x1x16x16xf32> to vector<16x16xf32>
    %c80 = arith.constant 80 : index
    %c0_154 = arith.constant 0 : index
    %78 = vector.load %arg6[%c80, %c0_154] : memref<160x80xf32, #tpu.memory_space<vmem>>, vector<16x16xf32>
    tpu.vector_store %arg6[%c80, %c0_154], %77 {strides = array<i32>} : memref<160x80xf32, #tpu.memory_space<vmem>>, vector<16x16xf32>,
    %c0_155 = arith.constant 0 : index
    %c1_156 = arith.constant 1 : index
    %c1_157 = arith.constant 1 : index
    %c0_158 = arith.constant 0 : index
    %c0_159 = arith.constant 0 : index
    %79 = vector.load %arg3[%c0_155, %c1_156, %c1_157, %c0_158, %c0_159] : memref<1x2x25x16x16xf32, #tpu.memory_space<vmem>>, vector<1x1x1x16x16xf32>
    %80 = vector.shape_cast %79 : vector<1x1x1x16x16xf32> to vector<16x16xf32>
    %c80_160 = arith.constant 80 : index
    %c16_161 = arith.constant 16 : index
    %81 = vector.load %arg6[%c80_160, %c16_161] : memref<160x80xf32, #tpu.memory_space<vmem>>, vector<16x16xf32>
    tpu.vector_store %arg6[%c80_160, %c16_161], %80 {strides = array<i32>} : memref<160x80xf32, #tpu.memory_space<vmem>>, vector<16x16xf32>,
    %c0_162 = arith.constant 0 : index
    %c1_163 = arith.constant 1 : index
    %c2_164 = arith.constant 2 : index
    %c0_165 = arith.constant 0 : index
    %c0_166 = arith.constant 0 : index
    %82 = vector.load %arg3[%c0_162, %c1_163, %c2_164, %c0_165, %c0_166] : memref<1x2x25x16x16xf32, #tpu.memory_space<vmem>>, vector<1x1x1x16x16xf32>
    %83 = vector.shape_cast %82 : vector<1x1x1x16x16xf32> to vector<16x16xf32>
    %c80_167 = arith.constant 80 : index
    %c32_168 = arith.constant 32 : index
    %84 = vector.load %arg6[%c80_167, %c32_168] : memref<160x80xf32, #tpu.memory_space<vmem>>, vector<16x16xf32>
    tpu.vector_store %arg6[%c80_167, %c32_168], %83 {strides = array<i32>} : memref<160x80xf32, #tpu.memory_space<vmem>>, vector<16x16xf32>,
    %c0_169 = arith.constant 0 : index
    %c1_170 = arith.constant 1 : index
    %c3_171 = arith.constant 3 : index
    %c0_172 = arith.constant 0 : index
    %c0_173 = arith.constant 0 : index
    %85 = vector.load %arg3[%c0_169, %c1_170, %c3_171, %c0_172, %c0_173] : memref<1x2x25x16x16xf32, #tpu.memory_space<vmem>>, vector<1x1x1x16x16xf32>
    %86 = vector.shape_cast %85 : vector<1x1x1x16x16xf32> to vector<16x16xf32>
    %c80_174 = arith.constant 80 : index
    %c48_175 = arith.constant 48 : index
    %87 = vector.load %arg6[%c80_174, %c48_175] : memref<160x80xf32, #tpu.memory_space<vmem>>, vector<16x16xf32>
    tpu.vector_store %arg6[%c80_174, %c48_175], %86 {strides = array<i32>} : memref<160x80xf32, #tpu.memory_space<vmem>>, vector<16x16xf32>,
    %c0_176 = arith.constant 0 : index
    %c1_177 = arith.constant 1 : index
    %c4_178 = arith.constant 4 : index
    %c0_179 = arith.constant 0 : index
    %c0_180 = arith.constant 0 : index
    %88 = vector.load %arg3[%c0_176, %c1_177, %c4_178, %c0_179, %c0_180] : memref<1x2x25x16x16xf32, #tpu.memory_space<vmem>>, vector<1x1x1x16x16xf32>
    %89 = vector.shape_cast %88 : vector<1x1x1x16x16xf32> to vector<16x16xf32>
    %c80_181 = arith.constant 80 : index
    %c64_182 = arith.constant 64 : index
    %90 = vector.load %arg6[%c80_181, %c64_182] : memref<160x80xf32, #tpu.memory_space<vmem>>, vector<16x16xf32>
    tpu.vector_store %arg6[%c80_181, %c64_182], %89 {strides = array<i32>} : memref<160x80xf32, #tpu.memory_space<vmem>>, vector<16x16xf32>,
    %c0_183 = arith.constant 0 : index
    %c1_184 = arith.constant 1 : index
    %c5_185 = arith.constant 5 : index
    %c0_186 = arith.constant 0 : index
    %c0_187 = arith.constant 0 : index
    %91 = vector.load %arg3[%c0_183, %c1_184, %c5_185, %c0_186, %c0_187] : memref<1x2x25x16x16xf32, #tpu.memory_space<vmem>>, vector<1x1x1x16x16xf32>
    %92 = vector.shape_cast %91 : vector<1x1x1x16x16xf32> to vector<16x16xf32>
    %c96 = arith.constant 96 : index
    %c0_188 = arith.constant 0 : index
    %93 = vector.load %arg6[%c96, %c0_188] : memref<160x80xf32, #tpu.memory_space<vmem>>, vector<16x16xf32>
    tpu.vector_store %arg6[%c96, %c0_188], %92 {strides = array<i32>} : memref<160x80xf32, #tpu.memory_space<vmem>>, vector<16x16xf32>,
    %c0_189 = arith.constant 0 : index
    %c1_190 = arith.constant 1 : index
    %c6_191 = arith.constant 6 : index
    %c0_192 = arith.constant 0 : index
    %c0_193 = arith.constant 0 : index
    %94 = vector.load %arg3[%c0_189, %c1_190, %c6_191, %c0_192, %c0_193] : memref<1x2x25x16x16xf32, #tpu.memory_space<vmem>>, vector<1x1x1x16x16xf32>
    %95 = vector.shape_cast %94 : vector<1x1x1x16x16xf32> to vector<16x16xf32>
    %c96_194 = arith.constant 96 : index
    %c16_195 = arith.constant 16 : index
    %96 = vector.load %arg6[%c96_194, %c16_195] : memref<160x80xf32, #tpu.memory_space<vmem>>, vector<16x16xf32>
    tpu.vector_store %arg6[%c96_194, %c16_195], %95 {strides = array<i32>} : memref<160x80xf32, #tpu.memory_space<vmem>>, vector<16x16xf32>,
    %c0_196 = arith.constant 0 : index
    %c1_197 = arith.constant 1 : index
    %c7_198 = arith.constant 7 : index
    %c0_199 = arith.constant 0 : index
    %c0_200 = arith.constant 0 : index
    %97 = vector.load %arg3[%c0_196, %c1_197, %c7_198, %c0_199, %c0_200] : memref<1x2x25x16x16xf32, #tpu.memory_space<vmem>>, vector<1x1x1x16x16xf32>
    %98 = vector.shape_cast %97 : vector<1x1x1x16x16xf32> to vector<16x16xf32>
    %c96_201 = arith.constant 96 : index
    %c32_202 = arith.constant 32 : index
    %99 = vector.load %arg6[%c96_201, %c32_202] : memref<160x80xf32, #tpu.memory_space<vmem>>, vector<16x16xf32>
    tpu.vector_store %arg6[%c96_201, %c32_202], %98 {strides = array<i32>} : memref<160x80xf32, #tpu.memory_space<vmem>>, vector<16x16xf32>,
    %c0_203 = arith.constant 0 : index
    %c1_204 = arith.constant 1 : index
    %c8_205 = arith.constant 8 : index
    %c0_206 = arith.constant 0 : index
    %c0_207 = arith.constant 0 : index
    %100 = vector.load %arg3[%c0_203, %c1_204, %c8_205, %c0_206, %c0_207] : memref<1x2x25x16x16xf32, #tpu.memory_space<vmem>>, vector<1x1x1x16x16xf32>
    %101 = vector.shape_cast %100 : vector<1x1x1x16x16xf32> to vector<16x16xf32>
    %c96_208 = arith.constant 96 : index
    %c48_209 = arith.constant 48 : index
    %102 = vector.load %arg6[%c96_208, %c48_209] : memref<160x80xf32, #tpu.memory_space<vmem>>, vector<16x16xf32>
    tpu.vector_store %arg6[%c96_208, %c48_209], %101 {strides = array<i32>} : memref<160x80xf32, #tpu.memory_space<vmem>>, vector<16x16xf32>,
    %c0_210 = arith.constant 0 : index
    %c1_211 = arith.constant 1 : index
    %c9_212 = arith.constant 9 : index
    %c0_213 = arith.constant 0 : index
    %c0_214 = arith.constant 0 : index
    %103 = vector.load %arg3[%c0_210, %c1_211, %c9_212, %c0_213, %c0_214] : memref<1x2x25x16x16xf32, #tpu.memory_space<vmem>>, vector<1x1x1x16x16xf32>
    %104 = vector.shape_cast %103 : vector<1x1x1x16x16xf32> to vector<16x16xf32>
    %c96_215 = arith.constant 96 : index
    %c64_216 = arith.constant 64 : index
    %105 = vector.load %arg6[%c96_215, %c64_216] : memref<160x80xf32, #tpu.memory_space<vmem>>, vector<16x16xf32>
    tpu.vector_store %arg6[%c96_215, %c64_216], %104 {strides = array<i32>} : memref<160x80xf32, #tpu.memory_space<vmem>>, vector<16x16xf32>,
    %c0_217 = arith.constant 0 : index
    %c1_218 = arith.constant 1 : index
    %c10_219 = arith.constant 10 : index
    %c0_220 = arith.constant 0 : index
    %c0_221 = arith.constant 0 : index
    %106 = vector.load %arg3[%c0_217, %c1_218, %c10_219, %c0_220, %c0_221] : memref<1x2x25x16x16xf32, #tpu.memory_space<vmem>>, vector<1x1x1x16x16xf32>
    %107 = vector.shape_cast %106 : vector<1x1x1x16x16xf32> to vector<16x16xf32>
    %c112 = arith.constant 112 : index
    %c0_222 = arith.constant 0 : index
    %108 = vector.load %arg6[%c112, %c0_222] : memref<160x80xf32, #tpu.memory_space<vmem>>, vector<16x16xf32>
    tpu.vector_store %arg6[%c112, %c0_222], %107 {strides = array<i32>} : memref<160x80xf32, #tpu.memory_space<vmem>>, vector<16x16xf32>,
    %c0_223 = arith.constant 0 : index
    %c1_224 = arith.constant 1 : index
    %c11_225 = arith.constant 11 : index
    %c0_226 = arith.constant 0 : index
    %c0_227 = arith.constant 0 : index
    %109 = vector.load %arg3[%c0_223, %c1_224, %c11_225, %c0_226, %c0_227] : memref<1x2x25x16x16xf32, #tpu.memory_space<vmem>>, vector<1x1x1x16x16xf32>
    %110 = vector.shape_cast %109 : vector<1x1x1x16x16xf32> to vector<16x16xf32>
    %c112_228 = arith.constant 112 : index
    %c16_229 = arith.constant 16 : index
    %111 = vector.load %arg6[%c112_228, %c16_229] : memref<160x80xf32, #tpu.memory_space<vmem>>, vector<16x16xf32>
    tpu.vector_store %arg6[%c112_228, %c16_229], %110 {strides = array<i32>} : memref<160x80xf32, #tpu.memory_space<vmem>>, vector<16x16xf32>,
    %c0_230 = arith.constant 0 : index
    %c1_231 = arith.constant 1 : index
    %c12_232 = arith.constant 12 : index
    %c0_233 = arith.constant 0 : index
    %c0_234 = arith.constant 0 : index
    %112 = vector.load %arg3[%c0_230, %c1_231, %c12_232, %c0_233, %c0_234] : memref<1x2x25x16x16xf32, #tpu.memory_space<vmem>>, vector<1x1x1x16x16xf32>
    %113 = vector.shape_cast %112 : vector<1x1x1x16x16xf32> to vector<16x16xf32>
    %c112_235 = arith.constant 112 : index
    %c32_236 = arith.constant 32 : index
    %114 = vector.load %arg6[%c112_235, %c32_236] : memref<160x80xf32, #tpu.memory_space<vmem>>, vector<16x16xf32>
    tpu.vector_store %arg6[%c112_235, %c32_236], %113 {strides = array<i32>} : memref<160x80xf32, #tpu.memory_space<vmem>>, vector<16x16xf32>,
    %c0_237 = arith.constant 0 : index
    %c1_238 = arith.constant 1 : index
    %c13_239 = arith.constant 13 : index
    %c0_240 = arith.constant 0 : index
    %c0_241 = arith.constant 0 : index
    %115 = vector.load %arg3[%c0_237, %c1_238, %c13_239, %c0_240, %c0_241] : memref<1x2x25x16x16xf32, #tpu.memory_space<vmem>>, vector<1x1x1x16x16xf32>
    %116 = vector.shape_cast %115 : vector<1x1x1x16x16xf32> to vector<16x16xf32>
    %c112_242 = arith.constant 112 : index
    %c48_243 = arith.constant 48 : index
    %117 = vector.load %arg6[%c112_242, %c48_243] : memref<160x80xf32, #tpu.memory_space<vmem>>, vector<16x16xf32>
    tpu.vector_store %arg6[%c112_242, %c48_243], %116 {strides = array<i32>} : memref<160x80xf32, #tpu.memory_space<vmem>>, vector<16x16xf32>,
    %c0_244 = arith.constant 0 : index
    %c1_245 = arith.constant 1 : index
    %c14_246 = arith.constant 14 : index
    %c0_247 = arith.constant 0 : index
    %c0_248 = arith.constant 0 : index
    %118 = vector.load %arg3[%c0_244, %c1_245, %c14_246, %c0_247, %c0_248] : memref<1x2x25x16x16xf32, #tpu.memory_space<vmem>>, vector<1x1x1x16x16xf32>
    %119 = vector.shape_cast %118 : vector<1x1x1x16x16xf32> to vector<16x16xf32>
    %c112_249 = arith.constant 112 : index
    %c64_250 = arith.constant 64 : index
    %120 = vector.load %arg6[%c112_249, %c64_250] : memref<160x80xf32, #tpu.memory_space<vmem>>, vector<16x16xf32>
    tpu.vector_store %arg6[%c112_249, %c64_250], %119 {strides = array<i32>} : memref<160x80xf32, #tpu.memory_space<vmem>>, vector<16x16xf32>,
    %c0_251 = arith.constant 0 : index
    %c1_252 = arith.constant 1 : index
    %c15_253 = arith.constant 15 : index
    %c0_254 = arith.constant 0 : index
    %c0_255 = arith.constant 0 : index
    %121 = vector.load %arg3[%c0_251, %c1_252, %c15_253, %c0_254, %c0_255] : memref<1x2x25x16x16xf32, #tpu.memory_space<vmem>>, vector<1x1x1x16x16xf32>
    %122 = vector.shape_cast %121 : vector<1x1x1x16x16xf32> to vector<16x16xf32>
    %c128 = arith.constant 128 : index
    %c0_256 = arith.constant 0 : index
    %123 = vector.load %arg6[%c128, %c0_256] : memref<160x80xf32, #tpu.memory_space<vmem>>, vector<16x16xf32>
    tpu.vector_store %arg6[%c128, %c0_256], %122 {strides = array<i32>} : memref<160x80xf32, #tpu.memory_space<vmem>>, vector<16x16xf32>,
    %c0_257 = arith.constant 0 : index
    %c1_258 = arith.constant 1 : index
    %c16_259 = arith.constant 16 : index
    %c0_260 = arith.constant 0 : index
    %c0_261 = arith.constant 0 : index
    %124 = vector.load %arg3[%c0_257, %c1_258, %c16_259, %c0_260, %c0_261] : memref<1x2x25x16x16xf32, #tpu.memory_space<vmem>>, vector<1x1x1x16x16xf32>
    %125 = vector.shape_cast %124 : vector<1x1x1x16x16xf32> to vector<16x16xf32>
    %c128_262 = arith.constant 128 : index
    %c16_263 = arith.constant 16 : index
    %126 = vector.load %arg6[%c128_262, %c16_263] : memref<160x80xf32, #tpu.memory_space<vmem>>, vector<16x16xf32>
    tpu.vector_store %arg6[%c128_262, %c16_263], %125 {strides = array<i32>} : memref<160x80xf32, #tpu.memory_space<vmem>>, vector<16x16xf32>,
    %c0_264 = arith.constant 0 : index
    %c1_265 = arith.constant 1 : index
    %c17_266 = arith.constant 17 : index
    %c0_267 = arith.constant 0 : index
    %c0_268 = arith.constant 0 : index
    %127 = vector.load %arg3[%c0_264, %c1_265, %c17_266, %c0_267, %c0_268] : memref<1x2x25x16x16xf32, #tpu.memory_space<vmem>>, vector<1x1x1x16x16xf32>
    %128 = vector.shape_cast %127 : vector<1x1x1x16x16xf32> to vector<16x16xf32>
    %c128_269 = arith.constant 128 : index
    %c32_270 = arith.constant 32 : index
    %129 = vector.load %arg6[%c128_269, %c32_270] : memref<160x80xf32, #tpu.memory_space<vmem>>, vector<16x16xf32>
    tpu.vector_store %arg6[%c128_269, %c32_270], %128 {strides = array<i32>} : memref<160x80xf32, #tpu.memory_space<vmem>>, vector<16x16xf32>,
    %c0_271 = arith.constant 0 : index
    %c1_272 = arith.constant 1 : index
    %c18_273 = arith.constant 18 : index
    %c0_274 = arith.constant 0 : index
    %c0_275 = arith.constant 0 : index
    %130 = vector.load %arg3[%c0_271, %c1_272, %c18_273, %c0_274, %c0_275] : memref<1x2x25x16x16xf32, #tpu.memory_space<vmem>>, vector<1x1x1x16x16xf32>
    %131 = vector.shape_cast %130 : vector<1x1x1x16x16xf32> to vector<16x16xf32>
    %c128_276 = arith.constant 128 : index
    %c48_277 = arith.constant 48 : index
    %132 = vector.load %arg6[%c128_276, %c48_277] : memref<160x80xf32, #tpu.memory_space<vmem>>, vector<16x16xf32>
    tpu.vector_store %arg6[%c128_276, %c48_277], %131 {strides = array<i32>} : memref<160x80xf32, #tpu.memory_space<vmem>>, vector<16x16xf32>,
    %c0_278 = arith.constant 0 : index
    %c1_279 = arith.constant 1 : index
    %c19_280 = arith.constant 19 : index
    %c0_281 = arith.constant 0 : index
    %c0_282 = arith.constant 0 : index
    %133 = vector.load %arg3[%c0_278, %c1_279, %c19_280, %c0_281, %c0_282] : memref<1x2x25x16x16xf32, #tpu.memory_space<vmem>>, vector<1x1x1x16x16xf32>
    %134 = vector.shape_cast %133 : vector<1x1x1x16x16xf32> to vector<16x16xf32>
    %c128_283 = arith.constant 128 : index
    %c64_284 = arith.constant 64 : index
    %135 = vector.load %arg6[%c128_283, %c64_284] : memref<160x80xf32, #tpu.memory_space<vmem>>, vector<16x16xf32>
    tpu.vector_store %arg6[%c128_283, %c64_284], %134 {strides = array<i32>} : memref<160x80xf32, #tpu.memory_space<vmem>>, vector<16x16xf32>,
    %c0_285 = arith.constant 0 : index
    %c1_286 = arith.constant 1 : index
    %c20_287 = arith.constant 20 : index
    %c0_288 = arith.constant 0 : index
    %c0_289 = arith.constant 0 : index
    %136 = vector.load %arg3[%c0_285, %c1_286, %c20_287, %c0_288, %c0_289] : memref<1x2x25x16x16xf32, #tpu.memory_space<vmem>>, vector<1x1x1x16x16xf32>
    %137 = vector.shape_cast %136 : vector<1x1x1x16x16xf32> to vector<16x16xf32>
    %c144 = arith.constant 144 : index
    %c0_290 = arith.constant 0 : index
    %138 = vector.load %arg6[%c144, %c0_290] : memref<160x80xf32, #tpu.memory_space<vmem>>, vector<16x16xf32>
    tpu.vector_store %arg6[%c144, %c0_290], %137 {strides = array<i32>} : memref<160x80xf32, #tpu.memory_space<vmem>>, vector<16x16xf32>,
    %c0_291 = arith.constant 0 : index
    %c1_292 = arith.constant 1 : index
    %c21_293 = arith.constant 21 : index
    %c0_294 = arith.constant 0 : index
    %c0_295 = arith.constant 0 : index
    %139 = vector.load %arg3[%c0_291, %c1_292, %c21_293, %c0_294, %c0_295] : memref<1x2x25x16x16xf32, #tpu.memory_space<vmem>>, vector<1x1x1x16x16xf32>
    %140 = vector.shape_cast %139 : vector<1x1x1x16x16xf32> to vector<16x16xf32>
    %c144_296 = arith.constant 144 : index
    %c16_297 = arith.constant 16 : index
    %141 = vector.load %arg6[%c144_296, %c16_297] : memref<160x80xf32, #tpu.memory_space<vmem>>, vector<16x16xf32>
    tpu.vector_store %arg6[%c144_296, %c16_297], %140 {strides = array<i32>} : memref<160x80xf32, #tpu.memory_space<vmem>>, vector<16x16xf32>,
    %c0_298 = arith.constant 0 : index
    %c1_299 = arith.constant 1 : index
    %c22_300 = arith.constant 22 : index
    %c0_301 = arith.constant 0 : index
    %c0_302 = arith.constant 0 : index
    %142 = vector.load %arg3[%c0_298, %c1_299, %c22_300, %c0_301, %c0_302] : memref<1x2x25x16x16xf32, #tpu.memory_space<vmem>>, vector<1x1x1x16x16xf32>
    %143 = vector.shape_cast %142 : vector<1x1x1x16x16xf32> to vector<16x16xf32>
    %c144_303 = arith.constant 144 : index
    %c32_304 = arith.constant 32 : index
    %144 = vector.load %arg6[%c144_303, %c32_304] : memref<160x80xf32, #tpu.memory_space<vmem>>, vector<16x16xf32>
    tpu.vector_store %arg6[%c144_303, %c32_304], %143 {strides = array<i32>} : memref<160x80xf32, #tpu.memory_space<vmem>>, vector<16x16xf32>,
    %c0_305 = arith.constant 0 : index
    %c1_306 = arith.constant 1 : index
    %c23_307 = arith.constant 23 : index
    %c0_308 = arith.constant 0 : index
    %c0_309 = arith.constant 0 : index
    %145 = vector.load %arg3[%c0_305, %c1_306, %c23_307, %c0_308, %c0_309] : memref<1x2x25x16x16xf32, #tpu.memory_space<vmem>>, vector<1x1x1x16x16xf32>
    %146 = vector.shape_cast %145 : vector<1x1x1x16x16xf32> to vector<16x16xf32>
    %c144_310 = arith.constant 144 : index
    %c48_311 = arith.constant 48 : index
    %147 = vector.load %arg6[%c144_310, %c48_311] : memref<160x80xf32, #tpu.memory_space<vmem>>, vector<16x16xf32>
    tpu.vector_store %arg6[%c144_310, %c48_311], %146 {strides = array<i32>} : memref<160x80xf32, #tpu.memory_space<vmem>>, vector<16x16xf32>,
    %c0_312 = arith.constant 0 : index
    %c1_313 = arith.constant 1 : index
    %c24_314 = arith.constant 24 : index
    %c0_315 = arith.constant 0 : index
    %c0_316 = arith.constant 0 : index
    %148 = vector.load %arg3[%c0_312, %c1_313, %c24_314, %c0_315, %c0_316] : memref<1x2x25x16x16xf32, #tpu.memory_space<vmem>>, vector<1x1x1x16x16xf32>
    %149 = vector.shape_cast %148 : vector<1x1x1x16x16xf32> to vector<16x16xf32>
    %c144_317 = arith.constant 144 : index
    %c64_318 = arith.constant 64 : index
    %150 = vector.load %arg6[%c144_317, %c64_318] : memref<160x80xf32, #tpu.memory_space<vmem>>, vector<16x16xf32>
    tpu.vector_store %arg6[%c144_317, %c64_318], %149 {strides = array<i32>} : memref<160x80xf32, #tpu.memory_space<vmem>>, vector<16x16xf32>,
    %c0_319 = arith.constant 0 : index
    %c0_320 = arith.constant 0 : index
    %151 = vector.load %arg6[%c0_319, %c0_320] : memref<160x80xf32, #tpu.memory_space<vmem>>, vector<160x80xf32>
    %152 = arith.truncf %151 : vector<160x80xf32> to vector<160x80xbf16>
    %153 = arith.extf %152 : vector<160x80xbf16> to vector<160x80xf32>
    %154 = arith.subf %151, %153 : vector<160x80xf32>
    %155 = arith.truncf %154 : vector<160x80xf32> to vector<160x80xbf16>
    %156 = arith.extf %155 : vector<160x80xbf16> to vector<160x80xf32>
    %157 = arith.subf %154, %156 : vector<160x80xf32>
    %158 = arith.truncf %157 : vector<160x80xf32> to vector<160x80xbf16>
    %cst = arith.constant dense<0.000000e+00> : vector<160x80xf32>
    %159 = tpu.matmul %152, %0, %cst {dimension_numbers = #tpu.dot_dimension_numbers<[1], [0], [0], [1], [0, 0, 1, 1], [], []>} : vector<160x80xbf16>, vector<80x80xbf16>, vector<160x80xf32> -> vector<160x80xf32>
    %cst_321 = arith.constant dense<0.000000e+00> : vector<160x80xf32>
    %160 = tpu.matmul %155, %0, %cst_321 {dimension_numbers = #tpu.dot_dimension_numbers<[1], [0], [0], [1], [0, 0, 1, 1], [], []>} : vector<160x80xbf16>, vector<80x80xbf16>, vector<160x80xf32> -> vector<160x80xf32>
    %161 = arith.addf %159, %160 : vector<160x80xf32>
    %cst_322 = arith.constant dense<0.000000e+00> : vector<160x80xf32>
    %162 = tpu.matmul %158, %0, %cst_322 {dimension_numbers = #tpu.dot_dimension_numbers<[1], [0], [0], [1], [0, 0, 1, 1], [], []>} : vector<160x80xbf16>, vector<80x80xbf16>, vector<160x80xf32> -> vector<160x80xf32>
    %163 = arith.addf %161, %162 : vector<160x80xf32>
    %164 = vector.extract_strided_slice %163 {offsets = [0, 0], sizes = [16, 80], strides = [1, 1]} : vector<160x80xf32> to vector<16x80xf32>
    %c0_323 = arith.constant 0 : index
    %c0_324 = arith.constant 0 : index
    %c0_325 = arith.constant 0 : index
    %c0_326 = arith.constant 0 : index
    %165 = vector.load %arg5[%c0_323, %c0_324, %c0_325, %c0_326] : memref<1x2x16x400xf32, #tpu.memory_space<vmem>>, vector<1x1x16x80xf32>
    %166 = vector.shape_cast %165 : vector<1x1x16x80xf32> to vector<16x80xf32>
    %167 = vector.shape_cast %164 : vector<16x80xf32> to vector<1x1x16x80xf32>
    tpu.vector_store %arg5[%c0_323, %c0_324, %c0_325, %c0_326], %167 {strides = array<i32>} : memref<1x2x16x400xf32, #tpu.memory_space<vmem>>, vector<1x1x16x80xf32>,
    %168 = vector.extract_strided_slice %163 {offsets = [16, 0], sizes = [16, 80], strides = [1, 1]} : vector<160x80xf32> to vector<16x80xf32>
    %c0_327 = arith.constant 0 : index
    %c0_328 = arith.constant 0 : index
    %c0_329 = arith.constant 0 : index
    %c80_330 = arith.constant 80 : index
    %169 = vector.load %arg5[%c0_327, %c0_328, %c0_329, %c80_330] : memref<1x2x16x400xf32, #tpu.memory_space<vmem>>, vector<1x1x16x80xf32>
    %170 = vector.shape_cast %169 : vector<1x1x16x80xf32> to vector<16x80xf32>
    %171 = vector.shape_cast %168 : vector<16x80xf32> to vector<1x1x16x80xf32>
    tpu.vector_store %arg5[%c0_327, %c0_328, %c0_329, %c80_330], %171 {strides = array<i32>} : memref<1x2x16x400xf32, #tpu.memory_space<vmem>>, vector<1x1x16x80xf32>,
    %172 = vector.extract_strided_slice %163 {offsets = [32, 0], sizes = [16, 80], strides = [1, 1]} : vector<160x80xf32> to vector<16x80xf32>
    %c0_331 = arith.constant 0 : index
    %c0_332 = arith.constant 0 : index
    %c0_333 = arith.constant 0 : index
    %c160 = arith.constant 160 : index
    %173 = vector.load %arg5[%c0_331, %c0_332, %c0_333, %c160] : memref<1x2x16x400xf32, #tpu.memory_space<vmem>>, vector<1x1x16x80xf32>
    %174 = vector.shape_cast %173 : vector<1x1x16x80xf32> to vector<16x80xf32>
    %175 = vector.shape_cast %172 : vector<16x80xf32> to vector<1x1x16x80xf32>
    tpu.vector_store %arg5[%c0_331, %c0_332, %c0_333, %c160], %175 {strides = array<i32>} : memref<1x2x16x400xf32, #tpu.memory_space<vmem>>, vector<1x1x16x80xf32>,
    %176 = vector.extract_strided_slice %163 {offsets = [48, 0], sizes = [16, 80], strides = [1, 1]} : vector<160x80xf32> to vector<16x80xf32>
    %c0_334 = arith.constant 0 : index
    %c0_335 = arith.constant 0 : index
    %c0_336 = arith.constant 0 : index
    %c240 = arith.constant 240 : index
    %177 = vector.load %arg5[%c0_334, %c0_335, %c0_336, %c240] : memref<1x2x16x400xf32, #tpu.memory_space<vmem>>, vector<1x1x16x80xf32>
    %178 = vector.shape_cast %177 : vector<1x1x16x80xf32> to vector<16x80xf32>
    %179 = vector.shape_cast %176 : vector<16x80xf32> to vector<1x1x16x80xf32>
    tpu.vector_store %arg5[%c0_334, %c0_335, %c0_336, %c240], %179 {strides = array<i32>} : memref<1x2x16x400xf32, #tpu.memory_space<vmem>>, vector<1x1x16x80xf32>,
    %180 = vector.extract_strided_slice %163 {offsets = [64, 0], sizes = [16, 80], strides = [1, 1]} : vector<160x80xf32> to vector<16x80xf32>
    %c0_337 = arith.constant 0 : index
    %c0_338 = arith.constant 0 : index
    %c0_339 = arith.constant 0 : index
    %c320 = arith.constant 320 : index
    %181 = vector.load %arg5[%c0_337, %c0_338, %c0_339, %c320] : memref<1x2x16x400xf32, #tpu.memory_space<vmem>>, vector<1x1x16x80xf32>
    %182 = vector.shape_cast %181 : vector<1x1x16x80xf32> to vector<16x80xf32>
    %183 = vector.shape_cast %180 : vector<16x80xf32> to vector<1x1x16x80xf32>
    tpu.vector_store %arg5[%c0_337, %c0_338, %c0_339, %c320], %183 {strides = array<i32>} : memref<1x2x16x400xf32, #tpu.memory_space<vmem>>, vector<1x1x16x80xf32>,
    %184 = vector.extract_strided_slice %163 {offsets = [80, 0], sizes = [16, 80], strides = [1, 1]} : vector<160x80xf32> to vector<16x80xf32>
    %c0_340 = arith.constant 0 : index
    %c1_341 = arith.constant 1 : index
    %c0_342 = arith.constant 0 : index
    %c0_343 = arith.constant 0 : index
    %185 = vector.load %arg5[%c0_340, %c1_341, %c0_342, %c0_343] : memref<1x2x16x400xf32, #tpu.memory_space<vmem>>, vector<1x1x16x80xf32>
    %186 = vector.shape_cast %185 : vector<1x1x16x80xf32> to vector<16x80xf32>
    %187 = vector.shape_cast %184 : vector<16x80xf32> to vector<1x1x16x80xf32>
    tpu.vector_store %arg5[%c0_340, %c1_341, %c0_342, %c0_343], %187 {strides = array<i32>} : memref<1x2x16x400xf32, #tpu.memory_space<vmem>>, vector<1x1x16x80xf32>,
    %188 = vector.extract_strided_slice %163 {offsets = [96, 0], sizes = [16, 80], strides = [1, 1]} : vector<160x80xf32> to vector<16x80xf32>
    %c0_344 = arith.constant 0 : index
    %c1_345 = arith.constant 1 : index
    %c0_346 = arith.constant 0 : index
    %c80_347 = arith.constant 80 : index
    %189 = vector.load %arg5[%c0_344, %c1_345, %c0_346, %c80_347] : memref<1x2x16x400xf32, #tpu.memory_space<vmem>>, vector<1x1x16x80xf32>
    %190 = vector.shape_cast %189 : vector<1x1x16x80xf32> to vector<16x80xf32>
    %191 = vector.shape_cast %188 : vector<16x80xf32> to vector<1x1x16x80xf32>
    tpu.vector_store %arg5[%c0_344, %c1_345, %c0_346, %c80_347], %191 {strides = array<i32>} : memref<1x2x16x400xf32, #tpu.memory_space<vmem>>, vector<1x1x16x80xf32>,
    %192 = vector.extract_strided_slice %163 {offsets = [112, 0], sizes = [16, 80], strides = [1, 1]} : vector<160x80xf32> to vector<16x80xf32>
    %c0_348 = arith.constant 0 : index
    %c1_349 = arith.constant 1 : index
    %c0_350 = arith.constant 0 : index
    %c160_351 = arith.constant 160 : index
    %193 = vector.load %arg5[%c0_348, %c1_349, %c0_350, %c160_351] : memref<1x2x16x400xf32, #tpu.memory_space<vmem>>, vector<1x1x16x80xf32>
    %194 = vector.shape_cast %193 : vector<1x1x16x80xf32> to vector<16x80xf32>
    %195 = vector.shape_cast %192 : vector<16x80xf32> to vector<1x1x16x80xf32>
    tpu.vector_store %arg5[%c0_348, %c1_349, %c0_350, %c160_351], %195 {strides = array<i32>} : memref<1x2x16x400xf32, #tpu.memory_space<vmem>>, vector<1x1x16x80xf32>,
    %196 = vector.extract_strided_slice %163 {offsets = [128, 0], sizes = [16, 80], strides = [1, 1]} : vector<160x80xf32> to vector<16x80xf32>
    %c0_352 = arith.constant 0 : index
    %c1_353 = arith.constant 1 : index
    %c0_354 = arith.constant 0 : index
    %c240_355 = arith.constant 240 : index
    %197 = vector.load %arg5[%c0_352, %c1_353, %c0_354, %c240_355] : memref<1x2x16x400xf32, #tpu.memory_space<vmem>>, vector<1x1x16x80xf32>
    %198 = vector.shape_cast %197 : vector<1x1x16x80xf32> to vector<16x80xf32>
    %199 = vector.shape_cast %196 : vector<16x80xf32> to vector<1x1x16x80xf32>
    tpu.vector_store %arg5[%c0_352, %c1_353, %c0_354, %c240_355], %199 {strides = array<i32>} : memref<1x2x16x400xf32, #tpu.memory_space<vmem>>, vector<1x1x16x80xf32>,
    %200 = vector.extract_strided_slice %163 {offsets = [144, 0], sizes = [16, 80], strides = [1, 1]} : vector<160x80xf32> to vector<16x80xf32>
    %c0_356 = arith.constant 0 : index
    %c1_357 = arith.constant 1 : index
    %c0_358 = arith.constant 0 : index
    %c320_359 = arith.constant 320 : index
    %201 = vector.load %arg5[%c0_356, %c1_357, %c0_358, %c320_359] : memref<1x2x16x400xf32, #tpu.memory_space<vmem>>, vector<1x1x16x80xf32>
    %202 = vector.shape_cast %201 : vector<1x1x16x80xf32> to vector<16x80xf32>
    %203 = vector.shape_cast %200 : vector<16x80xf32> to vector<1x1x16x80xf32>
    tpu.vector_store %arg5[%c0_356, %c1_357, %c0_358, %c320_359], %203 {strides = array<i32>} : memref<1x2x16x400xf32, #tpu.memory_space<vmem>>, vector<1x1x16x80xf32>,
    return
  }
  func.func @transform_0(%arg0: i32, %arg1: i32, %arg2: i32) -> (i32, i32, i32, i32, i32) {
    %c0_i32 = arith.constant 0 : i32
    %c0_i32_0 = arith.constant 0 : i32
    %c0_i32_1 = arith.constant 0 : i32
    return %arg0, %arg1, %c0_i32, %arg2, %c0_i32_0 : i32, i32, i32, i32, i32
  }
  func.func @transform_1(%arg0: i32, %arg1: i32, %arg2: i32) -> (i32, i32) {
    %c0_i32 = arith.constant 0 : i32
    %c0_i32_0 = arith.constant 0 : i32
    %c0_i32_1 = arith.constant 0 : i32
    return %c0_i32, %c0_i32_0 : i32, i32
  }
  func.func @transform_2(%arg0: i32, %arg1: i32, %arg2: i32) -> (i32, i32, i32, i32) {
    %c0_i32 = arith.constant 0 : i32
    %c0_i32_0 = arith.constant 0 : i32
    return %arg0, %arg1, %arg2, %c0_i32 : i32, i32, i32, i32
  }
}

</mosaic_0001>

<llo_original>
// kernel: tpu_custom_call.1
$region0: #{tpu_custom_call.1}
  #allocation0 [shape = 'u32[]', space=smem, size = 0x4, offset = 0x4, fixed_abs, tag = 'smem constant byte address 0x4 - core index']
  #allocation1 [shape = 'u32[72,128]{1,0:T(1,128)}', space=vmem, size = 0x9000, scoped, tag = 'internal scratch']
  #allocation2 [shape = 'f32[160,80]{1,0:T(8,128)}', space=vmem, size = 0x14000, scoped, tag = 'scratch operand']
  %s0 = inlined_call_operand.vmem [shape: f32[2,2,25,16,16], index: 0, kind: input, shape index: {}]
  %s1 = inlined_call_operand.vmem [shape: bf16[80,80], index: 1, kind: input, shape index: {}]
  %s2 = inlined_call_operand.hbm [shape: f32[2,2,16,400], index: 2, kind: output, shape index: {}]
  %s3 = sld [smem:[#allocation0]]
  $region41: #{tpu_custom_call.1} parent=0
    _
  %s5 = ssub.s32 1, %s3
  %s6 = scalar_select 0, %s5, %s3
  $region1: #{tpu_custom_call.1} parent=0
    #allocation3 [shape = 'u8[131072]{0}', space=vmem, size = 0x20000, scoped, tag = 'output window, operand 0']
    #allocation4 [shape = 's32[2]{0}', space=sflag, size = 0x8, scoped, tag = 'scoped memory for tpu_custom_call.1']
    %7 = vsyncpa [#allocation4], 0
    %s8 = scalar_lea.sflag [#allocation4], 1
    %9 = vsyncpa %s8, 0
    loop: start=0, step=1, limit=4
    $region2: #{tpu_custom_call.1} parent=1 // loop_pre_header
      _
    $region3: #{tpu_custom_call.1} parent=1 // loop_header
      %s11 = sphi 0, %s15
      %p12 = scmp.ge.s32.totalorder %s11, 4
      %s18 = sphi 0, %s37
      %s19 = sphi 0, %s33
      %s20 = sphi 0, %s29
      %s21 = sphi 0, %s18
      %s22 = sphi 0, %s19
      %s23 = sphi 0, %s20
      %s24 = sphi 0, %s21
      %s25 = sphi 0, %s22
      %s26 = sphi 0, %s23
      %s44 = sphi 0, %s46
      %s47 = sphi 0, %s44
      %s48 = sphi 0, %s47
      %s64 = sphi 0, %s48
      %s68 = sphi 0, %s68
      %s70 = sphi 0, %s68
      %s71 = sphi 0, %s70
      %s85 = sphi 0, %s71
      %s95 = sphi 0, %s97
      %s98 = sphi 0, %s95
      %s99 = sphi 0, %s98
      %s115 = sphi 0, %s99
    $region4: #{tpu_custom_call.1} parent=1 // loop_header_branch
      %14 = sbr.rel (%p12) target = $region8
    $region5: #{tpu_custom_call.1} parent=1 // loop_body
      %s16 = ssub.s32 %s11, 1
      %s17 = ssub.s32 %s11, 2
      %s27 = sadd.s32 1, %s20
      %p28 = scmp.ge.s32.totalorder %s27, 1
      %s29 = scalar_select %p28, 0, %s27
      %s30 = sadd.s32 1, %s19
      %s31 = scalar_select %p28, %s30, %s19
      %p32 = scmp.ge.s32.totalorder %s31, 1
      %s33 = scalar_select %p32, 0, %s31
      %s34 = sadd.s32 1, %s18
      %s35 = scalar_select %p32, %s34, %s18
      %p36 = scmp.ge.s32.totalorder %s35, 2
      %s37 = scalar_select %p36, 0, %s35
      %s38 = ssub.s32 %s18, %s37
      %s39 = ssub.s32 %s19, %s33
      %s40 = sor.u32 %s38, %s39
      %s41 = ssub.s32 %s20, %s29
      %s42 = sor.u32 %s40, %s41
      %p43 = scmp.eq.s32.totalorder %s42, 0
      %s45 = sadd.s32 %s44, 1
      %s46 = scalar_select %p43, %s44, %s45
      %p49 = pneg %p43
      %p50 = scmp.eq.s32.totalorder %s11, 1
      %p51 = por %p49, %p50
      %p52 = scmp.ne.s32.totalorder %s44, %s47
      %p53 = scmp.eq.s32.totalorder %s11, 0
      %p54 = por %p52, %p53
      %p55 = scmp.ne.s32.totalorder %s44, %s47
      %p56 = scmp.eq.s32.totalorder %s16, 1
      %p57 = por %p55, %p56
      %p58 = scmp.ne.s32.totalorder %s47, %s48
      %p59 = scmp.eq.s32.totalorder %s16, 0
      %p60 = por %p58, %p59
      %p61 = scmp.ne.s32.totalorder %s47, %s48
      %p62 = scmp.eq.s32.totalorder %s17, 1
      %p63 = por %p61, %p62
      %p65 = scmp.ne.s32.totalorder %s48, %s64
      %p66 = scmp.eq.s32.totalorder %s17, 0
      %p67 = por %p65, %p66
      %s69 = sadd.s32 %s68, 1
      %p72 = scmp.eq.s32.totalorder %s11, 1
      %p73 = scmp.ne.s32.totalorder %s68, %s70
      %p74 = scmp.eq.s32.totalorder %s11, 0
      %p75 = por %p73, %p74
      %p76 = scmp.ne.s32.totalorder %s68, %s70
      %p77 = scmp.eq.s32.totalorder %s16, 1
      %p78 = por %p76, %p77
      %p79 = scmp.ne.s32.totalorder %s70, %s71
      %p80 = scmp.eq.s32.totalorder %s16, 0
      %p81 = por %p79, %p80
      %p82 = scmp.ne.s32.totalorder %s70, %s71
      %p83 = scmp.eq.s32.totalorder %s17, 1
      %p84 = por %p82, %p83
      %p86 = scmp.ne.s32.totalorder %s71, %s85
      %p87 = scmp.eq.s32.totalorder %s17, 0
      %p88 = por %p86, %p87
      %s89 = ssub.s32 %s18, %s37
      %s90 = ssub.s32 %s19, %s33
      %s91 = sor.u32 %s89, %s90
      %s92 = ssub.s32 %s20, %s29
      %s93 = sor.u32 %s91, %s92
      %p94 = scmp.eq.s32.totalorder %s93, 0
      %s96 = sadd.s32 %s95, 1
      %s97 = scalar_select %p94, %s95, %s96
      %p100 = pneg %p94
      %p101 = scmp.eq.s32.totalorder %s11, 1
      %p102 = por %p100, %p101
      %p103 = scmp.ne.s32.totalorder %s95, %s98
      %p104 = scmp.eq.s32.totalorder %s11, 0
      %p105 = por %p103, %p104
      %p106 = scmp.ne.s32.totalorder %s95, %s98
      %p107 = scmp.eq.s32.totalorder %s16, 1
      %p108 = por %p106, %p107
      %p109 = scmp.ne.s32.totalorder %s98, %s99
      %p110 = scmp.eq.s32.totalorder %s16, 0
      %p111 = por %p109, %p110
      %p112 = scmp.ne.s32.totalorder %s98, %s99
      %p113 = scmp.eq.s32.totalorder %s17, 1
      %p114 = por %p112, %p113
      %p116 = scmp.ne.s32.totalorder %s99, %s115
      %p117 = scmp.eq.s32.totalorder %s17, 0
      %p118 = por %p116, %p117
      %p119 = scmp.le.s32.totalorder 1, %s11
      %p120 = scmp.lt.s32.totalorder %s11, 3
      %p121 = pnand %p119, %p120
      %p122 = pneg %p121
      // Predicated region
      $region9: #{tpu_custom_call.1} parent=5 // pred_check
        _
      $region10: #{tpu_custom_call.1} parent=5 // pred_check_branch
        %124 = sbr.rel (%p121) target = $region12
      $region11: #{tpu_custom_call.1} parent=5 // pred_region
        %s125 = ssub.s32 %s11, 1
        // Predicated region
        $region13: #{tpu_custom_call.1} parent=11 // pred_check
          %p126 = pneg %p81
        $region14: #{tpu_custom_call.1} parent=11 // pred_check_branch
          %128 = sbr.rel (%p126) target = $region16
        $region15: #{tpu_custom_call.1} parent=11 // pred_region
          _
        $region16: #{tpu_custom_call.1} parent=11 // pred_fallthru
          _
      $region12: #{tpu_custom_call.1} parent=5 // pred_fallthru
        _
      %p129 = scmp.lt.s32.totalorder %s11, 2
      // Predicated region
      $region17: #{tpu_custom_call.1} parent=5 // pred_check
        %p130 = pneg %p129
      $region18: #{tpu_custom_call.1} parent=5 // pred_check_branch
        %132 = sbr.rel (%p130) target = $region20
      $region19: #{tpu_custom_call.1} parent=5 // pred_region
        // Predicated region
        $region21: #{tpu_custom_call.1} parent=19 // pred_check
          %p133 = pneg %p54
        $region22: #{tpu_custom_call.1} parent=19 // pred_check_branch
          %135 = sbr.rel (%p133) target = $region24
        $region23: #{tpu_custom_call.1} parent=19 // pred_region
          %s136 = smul.u32 2, %s19
          %s137 = smul.u32 2, %s20
          %p138 = scmp.lt.s32.totalorder %s18, 1
          %s139 = scalar_select %p138, %s18, 1
          %p140 = scmp.lt.s32.totalorder %s136, 1
          %s141 = scalar_select %p140, %s136, 1
          %p142 = scmp.lt.s32.totalorder %s137, 1
          %s143 = scalar_select %p142, %s137, 1
          %s144 = smul.addr %s141, 50
          %s145 = sadd.s32 %s143, %s144
          %s146 = smul.addr %s139, 100
          %s147 = sadd.s32 %s145, %s146
          %s148 = smul.addr %s147, 8
          %s149 = scalar_lea.vmem %s0, %s148
          %s150 = smul.u32 2, %s19
          %s151 = smul.u32 2, %s20
        $region24: #{tpu_custom_call.1} parent=19 // pred_fallthru
          _
      $region20: #{tpu_custom_call.1} parent=5 // pred_fallthru
        _
      %p152 = scmp.le.s32.totalorder 1, %s11
      %p153 = scmp.lt.s32.totalorder %s11, 3
      %p154 = pnand %p152, %p153
      %p155 = pneg %p154
      // Predicated region
      $region25: #{tpu_custom_call.1} parent=5 // pred_check
        _
      $region26: #{tpu_custom_call.1} parent=5 // pred_check_branch
        %157 = sbr.rel (%p154) target = $region28
      $region27: #{tpu_custom_call.1} parent=5 // pred_region
        %s158 = ssub.s32 %s11, 1
        %s159 = smul.u32 2, %s22
        %s160 = smul.u32 2, %s23
        %p161 = scmp.lt.s32.totalorder %s21, 1
        %s162 = scalar_select %p161, %s21, 1
        %p163 = scmp.lt.s32.totalorder %s159, 1
        %s164 = scalar_select %p163, %s159, 1
        %p165 = scmp.lt.s32.totalorder %s160, 1
        %s166 = scalar_select %p165, %s160, 1
        %s167 = smul.addr %s164, 50
        %s168 = sadd.s32 %s166, %s167
        %s169 = smul.addr %s162, 100
        %s170 = sadd.s32 %s168, %s169
        %s171 = smul.addr %s170, 8
        %s172 = scalar_lea.vmem %s0, %s171
        %p173 = pneg %p60
        %p174 = pneg %p57
        %p175 = pneg %p81
        %p176 = pneg %p78
        %p177 = pneg %p111
        %p178 = pneg %p108
        %s179 = sand.u32 %s98, 1
        %s180 = scalar_lea.sflag [#allocation4], %s179
        %s181 = sand.u32 %s98, 1
        %s182 = smul.addr %s181, 128
        %s183 = scalar_lea.vmem [#allocation3], %s182
        %s184 = smul.u32 2, %s22
        %s185 = smul.u32 2, %s23
        %p186 = scmp.lt.s32.totalorder %s21, 1
        %s187 = scalar_select %p186, %s21, 1
        %p188 = scmp.lt.s32.totalorder %s184, 1
        %s189 = scalar_select %p188, %s184, 1
        %p190 = scmp.lt.s32.totalorder %s185, 1
        %s191 = scalar_select %p190, %s185, 1
        %s192 = smul.addr %s189, 50
        %s193 = sadd.s32 %s191, %s192
        %s194 = smul.addr %s187, 100
        %s195 = sadd.s32 %s193, %s194
        %s196 = smul.addr %s195, 8
        %s197 = scalar_lea.vmem %s0, %s196
        %s198 = smul.u32 2, %s22
        %s199 = smul.u32 2, %s23
        %s200 = smul.u32 2, %s22
        %s201 = smul.u32 2, %s23
        %v203 = vld [vmem:[%s1] sm:$0xf]
        %v204 = vld [vmem:[%s1 + $0x4] sm:$0xf]
        %v205 = vld [vmem:[%s1 + $0x8] sm:$0xf]
        %v206 = vld [vmem:[%s1 + $0xc] sm:$0xf]
        %v207 = vld [vmem:[%s1 + $0x10] sm:$0xf]
        %v208 = vld [vmem:[%s1 + $0x14] sm:$0xf]
        %v209 = vld [vmem:[%s1 + $0x18] sm:$0xf]
        %v210 = vld [vmem:[%s1 + $0x1c] sm:$0xf]
        %v211 = vld [vmem:[%s1 + $0x20] sm:$0xf]
        %v212 = vld [vmem:[%s1 + $0x24] sm:$0xf]
        %v213 = vld [vmem:[%s197] sm:$0xff]
        %v214 = vld [vmem:[%s197 + $0x8] sm:$0xff]
        %vm215 = vcmask 130048
        %216 = vst.msk [vmem:[#allocation2] sm:$0xff] %vm215, %v213
        %217 = vst.msk [vmem:[#allocation2 + $0x8] sm:$0xff] %vm215, %v214
        %s218 = scalar_lea.vmem %s197, 16
        %v219 = vld [vmem:[%s218] sm:$0xff]
        %v220 = vld [vmem:[%s218 + $0x8] sm:$0xff]
        %223 = vrot.lane.b32.xlu0 %v219, 16
        %v224 = vpop.permute.xlu0 %223
        %225 = vrot.lane.b32.xlu0 %v220, 16
        %v226 = vpop.permute.xlu0 %225
        %vm229 = vcmask 261248
        %230 = vst.msk [vmem:[#allocation2] sm:$0xff] %vm229, %v224
        %231 = vst.msk [vmem:[#allocation2 + $0x8] sm:$0xff] %vm229, %v226
        %s232 = scalar_lea.vmem %s197, 32
        %v233 = vld [vmem:[%s232] sm:$0xff]
        %v234 = vld [vmem:[%s232 + $0x8] sm:$0xff]
        %237 = vrot.lane.b32.xlu0 %v233, 32
        %v238 = vpop.permute.xlu0 %237
        %239 = vrot.lane.b32.xlu0 %v234, 32
        %v240 = vpop.permute.xlu0 %239
        %vm243 = vcmask 392448
        %244 = vst.msk [vmem:[#allocation2] sm:$0xff] %vm243, %v238
        %245 = vst.msk [vmem:[#allocation2 + $0x8] sm:$0xff] %vm243, %v240
        %s246 = scalar_lea.vmem %s197, 48
        %v247 = vld [vmem:[%s246] sm:$0xff]
        %v248 = vld [vmem:[%s246 + $0x8] sm:$0xff]
        %251 = vrot.lane.b32.xlu0 %v247, 48
        %v252 = vpop.permute.xlu0 %251
        %253 = vrot.lane.b32.xlu0 %v248, 48
        %v254 = vpop.permute.xlu0 %253
        %vm257 = vcmask 523648
        %258 = vst.msk [vmem:[#allocation2] sm:$0xff] %vm257, %v252
        %259 = vst.msk [vmem:[#allocation2 + $0x8] sm:$0xff] %vm257, %v254
        %s260 = scalar_lea.vmem %s197, 64
        %v261 = vld [vmem:[%s260] sm:$0xff]
        %v262 = vld [vmem:[%s260 + $0x8] sm:$0xff]
        %265 = vrot.lane.b32.xlu0 %v261, 64
        %v266 = vpop.permute.xlu0 %265
        %267 = vrot.lane.b32.xlu0 %v262, 64
        %v268 = vpop.permute.xlu0 %267
        %vm271 = vcmask 654848
        %272 = vst.msk [vmem:[#allocation2] sm:$0xff] %vm271, %v266
        %273 = vst.msk [vmem:[#allocation2 + $0x8] sm:$0xff] %vm271, %v268
        %s274 = scalar_lea.vmem %s197, 80
        %v275 = vld [vmem:[%s274] sm:$0xff]
        %v276 = vld [vmem:[%s274 + $0x8] sm:$0xff]
        %277 = vst.msk [vmem:[#allocation2 + $0x10] sm:$0xff] %vm215, %v275
        %278 = vst.msk [vmem:[#allocation2 + $0x18] sm:$0xff] %vm215, %v276
        %s279 = scalar_lea.vmem %s197, 96
        %v280 = vld [vmem:[%s279] sm:$0xff]
        %v281 = vld [vmem:[%s279 + $0x8] sm:$0xff]
        %284 = vrot.lane.b32.xlu0 %v280, 16
        %v285 = vpop.permute.xlu0 %284
        %286 = vrot.lane.b32.xlu0 %v281, 16
        %v287 = vpop.permute.xlu0 %286
        %290 = vst.msk [vmem:[#allocation2 + $0x10] sm:$0xff] %vm229, %v285
        %291 = vst.msk [vmem:[#allocation2 + $0x18] sm:$0xff] %vm229, %v287
        %s292 = scalar_lea.vmem %s197, 112
        %v293 = vld [vmem:[%s292] sm:$0xff]
        %v294 = vld [vmem:[%s292 + $0x8] sm:$0xff]
        %297 = vrot.lane.b32.xlu0 %v293, 32
        %v298 = vpop.permute.xlu0 %297
        %299 = vrot.lane.b32.xlu0 %v294, 32
        %v300 = vpop.permute.xlu0 %299
        %303 = vst.msk [vmem:[#allocation2 + $0x10] sm:$0xff] %vm243, %v298
        %304 = vst.msk [vmem:[#allocation2 + $0x18] sm:$0xff] %vm243, %v300
        %s305 = scalar_lea.vmem %s197, 128
        %v306 = vld [vmem:[%s305] sm:$0xff]
        %v307 = vld [vmem:[%s305 + $0x8] sm:$0xff]
        %310 = vrot.lane.b32.xlu0 %v306, 48
        %v311 = vpop.permute.xlu0 %310
        %312 = vrot.lane.b32.xlu0 %v307, 48
        %v313 = vpop.permute.xlu0 %312
        %316 = vst.msk [vmem:[#allocation2 + $0x10] sm:$0xff] %vm257, %v311
        %317 = vst.msk [vmem:[#allocation2 + $0x18] sm:$0xff] %vm257, %v313
        %s318 = scalar_lea.vmem %s197, 144
        %v319 = vld [vmem:[%s318] sm:$0xff]
        %v320 = vld [vmem:[%s318 + $0x8] sm:$0xff]
        %323 = vrot.lane.b32.xlu0 %v319, 64
        %v324 = vpop.permute.xlu0 %323
        %325 = vrot.lane.b32.xlu0 %v320, 64
        %v326 = vpop.permute.xlu0 %325
        %329 = vst.msk [vmem:[#allocation2 + $0x10] sm:$0xff] %vm271, %v324
        %330 = vst.msk [vmem:[#allocation2 + $0x18] sm:$0xff] %vm271, %v326
        %s331 = scalar_lea.vmem %s197, 160
        %v332 = vld [vmem:[%s331] sm:$0xff]
        %v333 = vld [vmem:[%s331 + $0x8] sm:$0xff]
        %334 = vst.msk [vmem:[#allocation2 + $0x20] sm:$0xff] %vm215, %v332
        %335 = vst.msk [vmem:[#allocation2 + $0x28] sm:$0xff] %vm215, %v333
        %s336 = scalar_lea.vmem %s197, 176
        %v337 = vld [vmem:[%s336] sm:$0xff]
        %v338 = vld [vmem:[%s336 + $0x8] sm:$0xff]
        %341 = vrot.lane.b32.xlu0 %v337, 16
        %v342 = vpop.permute.xlu0 %341
        %343 = vrot.lane.b32.xlu0 %v338, 16
        %v344 = vpop.permute.xlu0 %343
        %347 = vst.msk [vmem:[#allocation2 + $0x20] sm:$0xff] %vm229, %v342
        %348 = vst.msk [vmem:[#allocation2 + $0x28] sm:$0xff] %vm229, %v344
        %s349 = scalar_lea.vmem %s197, 192
        %v350 = vld [vmem:[%s349] sm:$0xff]
        %v351 = vld [vmem:[%s349 + $0x8] sm:$0xff]
        %354 = vrot.lane.b32.xlu0 %v350, 32
        %v355 = vpop.permute.xlu0 %354
        %356 = vrot.lane.b32.xlu0 %v351, 32
        %v357 = vpop.permute.xlu0 %356
        %360 = vst.msk [vmem:[#allocation2 + $0x20] sm:$0xff] %vm243, %v355
        %361 = vst.msk [vmem:[#allocation2 + $0x28] sm:$0xff] %vm243, %v357
        %s362 = scalar_lea.vmem %s197, 208
        %v363 = vld [vmem:[%s362] sm:$0xff]
        %v364 = vld [vmem:[%s362 + $0x8] sm:$0xff]
        %367 = vrot.lane.b32.xlu0 %v363, 48
        %v368 = vpop.permute.xlu0 %367
        %369 = vrot.lane.b32.xlu0 %v364, 48
        %v370 = vpop.permute.xlu0 %369
        %373 = vst.msk [vmem:[#allocation2 + $0x20] sm:$0xff] %vm257, %v368
        %374 = vst.msk [vmem:[#allocation2 + $0x28] sm:$0xff] %vm257, %v370
        %s375 = scalar_lea.vmem %s197, 224
        %v376 = vld [vmem:[%s375] sm:$0xff]
        %v377 = vld [vmem:[%s375 + $0x8] sm:$0xff]
        %380 = vrot.lane.b32.xlu0 %v376, 64
        %v381 = vpop.permute.xlu0 %380
        %382 = vrot.lane.b32.xlu0 %v377, 64
        %v383 = vpop.permute.xlu0 %382
        %386 = vst.msk [vmem:[#allocation2 + $0x20] sm:$0xff] %vm271, %v381
        %387 = vst.msk [vmem:[#allocation2 + $0x28] sm:$0xff] %vm271, %v383
        %s388 = scalar_lea.vmem %s197, 240
        %v389 = vld [vmem:[%s388] sm:$0xff]
        %v390 = vld [vmem:[%s388 + $0x8] sm:$0xff]
        %391 = vst.msk [vmem:[#allocation2 + $0x30] sm:$0xff] %vm215, %v389
        %392 = vst.msk [vmem:[#allocation2 + $0x38] sm:$0xff] %vm215, %v390
        %s393 = scalar_lea.vmem %s197, 256
        %v394 = vld [vmem:[%s393] sm:$0xff]
        %v395 = vld [vmem:[%s393 + $0x8] sm:$0xff]
        %398 = vrot.lane.b32.xlu0 %v394, 16
        %v399 = vpop.permute.xlu0 %398
        %400 = vrot.lane.b32.xlu0 %v395, 16
        %v401 = vpop.permute.xlu0 %400
        %404 = vst.msk [vmem:[#allocation2 + $0x30] sm:$0xff] %vm229, %v399
        %405 = vst.msk [vmem:[#allocation2 + $0x38] sm:$0xff] %vm229, %v401
        %s406 = scalar_lea.vmem %s197, 272
        %v407 = vld [vmem:[%s406] sm:$0xff]
        %v408 = vld [vmem:[%s406 + $0x8] sm:$0xff]
        %411 = vrot.lane.b32.xlu0 %v407, 32
        %v412 = vpop.permute.xlu0 %411
        %413 = vrot.lane.b32.xlu0 %v408, 32
        %v414 = vpop.permute.xlu0 %413
        %417 = vst.msk [vmem:[#allocation2 + $0x30] sm:$0xff] %vm243, %v412
        %418 = vst.msk [vmem:[#allocation2 + $0x38] sm:$0xff] %vm243, %v414
        %s419 = scalar_lea.vmem %s197, 288
        %v420 = vld [vmem:[%s419] sm:$0xff]
        %v421 = vld [vmem:[%s419 + $0x8] sm:$0xff]
        %424 = vrot.lane.b32.xlu0 %v420, 48
        %v425 = vpop.permute.xlu0 %424
        %426 = vrot.lane.b32.xlu0 %v421, 48
        %v427 = vpop.permute.xlu0 %426
        %430 = vst.msk [vmem:[#allocation2 + $0x30] sm:$0xff] %vm257, %v425
        %431 = vst.msk [vmem:[#allocation2 + $0x38] sm:$0xff] %vm257, %v427
        %s432 = scalar_lea.vmem %s197, 304
        %v433 = vld [vmem:[%s432] sm:$0xff]
        %v434 = vld [vmem:[%s432 + $0x8] sm:$0xff]
        %437 = vrot.lane.b32.xlu0 %v433, 64
        %v438 = vpop.permute.xlu0 %437
        %439 = vrot.lane.b32.xlu0 %v434, 64
        %v440 = vpop.permute.xlu0 %439
        %443 = vst.msk [vmem:[#allocation2 + $0x30] sm:$0xff] %vm271, %v438
        %444 = vst.msk [vmem:[#allocation2 + $0x38] sm:$0xff] %vm271, %v440
        %s445 = scalar_lea.vmem %s197, 320
        %v446 = vld [vmem:[%s445] sm:$0xff]
        %v447 = vld [vmem:[%s445 + $0x8] sm:$0xff]
        %448 = vst.msk [vmem:[#allocation2 + $0x40] sm:$0xff] %vm215, %v446
        %449 = vst.msk [vmem:[#allocation2 + $0x48] sm:$0xff] %vm215, %v447
        %s450 = scalar_lea.vmem %s197, 336
        %v451 = vld [vmem:[%s450] sm:$0xff]
        %v452 = vld [vmem:[%s450 + $0x8] sm:$0xff]
        %455 = vrot.lane.b32.xlu0 %v451, 16
        %v456 = vpop.permute.xlu0 %455
        %457 = vrot.lane.b32.xlu0 %v452, 16
        %v458 = vpop.permute.xlu0 %457
        %461 = vst.msk [vmem:[#allocation2 + $0x40] sm:$0xff] %vm229, %v456
        %462 = vst.msk [vmem:[#allocation2 + $0x48] sm:$0xff] %vm229, %v458
        %s463 = scalar_lea.vmem %s197, 352
        %v464 = vld [vmem:[%s463] sm:$0xff]
        %v465 = vld [vmem:[%s463 + $0x8] sm:$0xff]
        %468 = vrot.lane.b32.xlu0 %v464, 32
        %v469 = vpop.permute.xlu0 %468
        %470 = vrot.lane.b32.xlu0 %v465, 32
        %v471 = vpop.permute.xlu0 %470
        %474 = vst.msk [vmem:[#allocation2 + $0x40] sm:$0xff] %vm243, %v469
        %475 = vst.msk [vmem:[#allocation2 + $0x48] sm:$0xff] %vm243, %v471
        %s476 = scalar_lea.vmem %s197, 368
        %v477 = vld [vmem:[%s476] sm:$0xff]
        %v478 = vld [vmem:[%s476 + $0x8] sm:$0xff]
        %481 = vrot.lane.b32.xlu0 %v477, 48
        %v482 = vpop.permute.xlu0 %481
        %483 = vrot.lane.b32.xlu0 %v478, 48
        %v484 = vpop.permute.xlu0 %483
        %487 = vst.msk [vmem:[#allocation2 + $0x40] sm:$0xff] %vm257, %v482
        %488 = vst.msk [vmem:[#allocation2 + $0x48] sm:$0xff] %vm257, %v484
        %s489 = scalar_lea.vmem %s197, 384
        %v490 = vld [vmem:[%s489] sm:$0xff]
        %v491 = vld [vmem:[%s489 + $0x8] sm:$0xff]
        %494 = vrot.lane.b32.xlu0 %v490, 64
        %v495 = vpop.permute.xlu0 %494
        %496 = vrot.lane.b32.xlu0 %v491, 64
        %v497 = vpop.permute.xlu0 %496
        %500 = vst.msk [vmem:[#allocation2 + $0x40] sm:$0xff] %vm271, %v495
        %501 = vst.msk [vmem:[#allocation2 + $0x48] sm:$0xff] %vm271, %v497
        %s502 = scalar_lea.vmem %s197, 400
        %v503 = vld [vmem:[%s502] sm:$0xff]
        %v504 = vld [vmem:[%s502 + $0x8] sm:$0xff]
        %505 = vst.msk [vmem:[#allocation2 + $0x50] sm:$0xff] %vm215, %v503
        %506 = vst.msk [vmem:[#allocation2 + $0x58] sm:$0xff] %vm215, %v504
        %s507 = scalar_lea.vmem %s197, 416
        %v508 = vld [vmem:[%s507] sm:$0xff]
        %v509 = vld [vmem:[%s507 + $0x8] sm:$0xff]
        %512 = vrot.lane.b32.xlu0 %v508, 16
        %v513 = vpop.permute.xlu0 %512
        %514 = vrot.lane.b32.xlu0 %v509, 16
        %v515 = vpop.permute.xlu0 %514
        %518 = vst.msk [vmem:[#allocation2 + $0x50] sm:$0xff] %vm229, %v513
        %519 = vst.msk [vmem:[#allocation2 + $0x58] sm:$0xff] %vm229, %v515
        %s520 = scalar_lea.vmem %s197, 432
        %v521 = vld [vmem:[%s520] sm:$0xff]
        %v522 = vld [vmem:[%s520 + $0x8] sm:$0xff]
        %525 = vrot.lane.b32.xlu0 %v521, 32
        %v526 = vpop.permute.xlu0 %525
        %527 = vrot.lane.b32.xlu0 %v522, 32
        %v528 = vpop.permute.xlu0 %527
        %531 = vst.msk [vmem:[#allocation2 + $0x50] sm:$0xff] %vm243, %v526
        %532 = vst.msk [vmem:[#allocation2 + $0x58] sm:$0xff] %vm243, %v528
        %s533 = scalar_lea.vmem %s197, 448
        %v534 = vld [vmem:[%s533] sm:$0xff]
        %v535 = vld [vmem:[%s533 + $0x8] sm:$0xff]
        %538 = vrot.lane.b32.xlu0 %v534, 48
        %v539 = vpop.permute.xlu0 %538
        %540 = vrot.lane.b32.xlu0 %v535, 48
        %v541 = vpop.permute.xlu0 %540
        %544 = vst.msk [vmem:[#allocation2 + $0x50] sm:$0xff] %vm257, %v539
        %545 = vst.msk [vmem:[#allocation2 + $0x58] sm:$0xff] %vm257, %v541
        %s546 = scalar_lea.vmem %s197, 464
        %v547 = vld [vmem:[%s546] sm:$0xff]
        %v548 = vld [vmem:[%s546 + $0x8] sm:$0xff]
        %551 = vrot.lane.b32.xlu0 %v547, 64
        %v552 = vpop.permute.xlu0 %551
        %553 = vrot.lane.b32.xlu0 %v548, 64
        %v554 = vpop.permute.xlu0 %553
        %557 = vst.msk [vmem:[#allocation2 + $0x50] sm:$0xff] %vm271, %v552
        %558 = vst.msk [vmem:[#allocation2 + $0x58] sm:$0xff] %vm271, %v554
        %s559 = scalar_lea.vmem %s197, 480
        %v560 = vld [vmem:[%s559] sm:$0xff]
        %v561 = vld [vmem:[%s559 + $0x8] sm:$0xff]
        %562 = vst.msk [vmem:[#allocation2 + $0x60] sm:$0xff] %vm215, %v560
        %563 = vst.msk [vmem:[#allocation2 + $0x68] sm:$0xff] %vm215, %v561
        %s564 = scalar_lea.vmem %s197, 496
        %v565 = vld [vmem:[%s564] sm:$0xff]
        %v566 = vld [vmem:[%s564 + $0x8] sm:$0xff]
        %569 = vrot.lane.b32.xlu0 %v565, 16
        %v570 = vpop.permute.xlu0 %569
        %571 = vrot.lane.b32.xlu0 %v566, 16
        %v572 = vpop.permute.xlu0 %571
        %575 = vst.msk [vmem:[#allocation2 + $0x60] sm:$0xff] %vm229, %v570
        %576 = vst.msk [vmem:[#allocation2 + $0x68] sm:$0xff] %vm229, %v572
        %s577 = scalar_lea.vmem %s197, 512
        %v578 = vld [vmem:[%s577] sm:$0xff]
        %v579 = vld [vmem:[%s577 + $0x8] sm:$0xff]
        %582 = vrot.lane.b32.xlu0 %v578, 32
        %v583 = vpop.permute.xlu0 %582
        %584 = vrot.lane.b32.xlu0 %v579, 32
        %v585 = vpop.permute.xlu0 %584
        %588 = vst.msk [vmem:[#allocation2 + $0x60] sm:$0xff] %vm243, %v583
        %589 = vst.msk [vmem:[#allocation2 + $0x68] sm:$0xff] %vm243, %v585
        %s590 = scalar_lea.vmem %s197, 528
        %v591 = vld [vmem:[%s590] sm:$0xff]
        %v592 = vld [vmem:[%s590 + $0x8] sm:$0xff]
        %595 = vrot.lane.b32.xlu0 %v591, 48
        %v596 = vpop.permute.xlu0 %595
        %597 = vrot.lane.b32.xlu0 %v592, 48
        %v598 = vpop.permute.xlu0 %597
        %601 = vst.msk [vmem:[#allocation2 + $0x60] sm:$0xff] %vm257, %v596
        %602 = vst.msk [vmem:[#allocation2 + $0x68] sm:$0xff] %vm257, %v598
        %s603 = scalar_lea.vmem %s197, 544
        %v604 = vld [vmem:[%s603] sm:$0xff]
        %v605 = vld [vmem:[%s603 + $0x8] sm:$0xff]
        %608 = vrot.lane.b32.xlu0 %v604, 64
        %v609 = vpop.permute.xlu0 %608
        %610 = vrot.lane.b32.xlu0 %v605, 64
        %v611 = vpop.permute.xlu0 %610
        %614 = vst.msk [vmem:[#allocation2 + $0x60] sm:$0xff] %vm271, %v609
        %615 = vst.msk [vmem:[#allocation2 + $0x68] sm:$0xff] %vm271, %v611
        %s616 = scalar_lea.vmem %s197, 560
        %v617 = vld [vmem:[%s616] sm:$0xff]
        %v618 = vld [vmem:[%s616 + $0x8] sm:$0xff]
        %619 = vst.msk [vmem:[#allocation2 + $0x70] sm:$0xff] %vm215, %v617
        %620 = vst.msk [vmem:[#allocation2 + $0x78] sm:$0xff] %vm215, %v618
        %s621 = scalar_lea.vmem %s197, 576
        %v622 = vld [vmem:[%s621] sm:$0xff]
        %v623 = vld [vmem:[%s621 + $0x8] sm:$0xff]
        %626 = vrot.lane.b32.xlu0 %v622, 16
        %v627 = vpop.permute.xlu0 %626
        %628 = vrot.lane.b32.xlu0 %v623, 16
        %v629 = vpop.permute.xlu0 %628
        %632 = vst.msk [vmem:[#allocation2 + $0x70] sm:$0xff] %vm229, %v627
        %633 = vst.msk [vmem:[#allocation2 + $0x78] sm:$0xff] %vm229, %v629
        %s634 = scalar_lea.vmem %s197, 592
        %v635 = vld [vmem:[%s634] sm:$0xff]
        %v636 = vld [vmem:[%s634 + $0x8] sm:$0xff]
        %639 = vrot.lane.b32.xlu0 %v635, 32
        %v640 = vpop.permute.xlu0 %639
        %641 = vrot.lane.b32.xlu0 %v636, 32
        %v642 = vpop.permute.xlu0 %641
        %645 = vst.msk [vmem:[#allocation2 + $0x70] sm:$0xff] %vm243, %v640
        %646 = vst.msk [vmem:[#allocation2 + $0x78] sm:$0xff] %vm243, %v642
        %s647 = scalar_lea.vmem %s197, 608
        %v648 = vld [vmem:[%s647] sm:$0xff]
        %v649 = vld [vmem:[%s647 + $0x8] sm:$0xff]
        %652 = vrot.lane.b32.xlu0 %v648, 48
        %v653 = vpop.permute.xlu0 %652
        %654 = vrot.lane.b32.xlu0 %v649, 48
        %v655 = vpop.permute.xlu0 %654
        %658 = vst.msk [vmem:[#allocation2 + $0x70] sm:$0xff] %vm257, %v653
        %659 = vst.msk [vmem:[#allocation2 + $0x78] sm:$0xff] %vm257, %v655
        %s660 = scalar_lea.vmem %s197, 624
        %v661 = vld [vmem:[%s660] sm:$0xff]
        %v662 = vld [vmem:[%s660 + $0x8] sm:$0xff]
        %665 = vrot.lane.b32.xlu0 %v661, 64
        %v666 = vpop.permute.xlu0 %665
        %667 = vrot.lane.b32.xlu0 %v662, 64
        %v668 = vpop.permute.xlu0 %667
        %671 = vst.msk [vmem:[#allocation2 + $0x70] sm:$0xff] %vm271, %v666
        %672 = vst.msk [vmem:[#allocation2 + $0x78] sm:$0xff] %vm271, %v668
        %s673 = scalar_lea.vmem %s197, 640
        %v674 = vld [vmem:[%s673] sm:$0xff]
        %v675 = vld [vmem:[%s673 + $0x8] sm:$0xff]
        %676 = vst.msk [vmem:[#allocation2 + $0x80] sm:$0xff] %vm215, %v674
        %677 = vst.msk [vmem:[#allocation2 + $0x88] sm:$0xff] %vm215, %v675
        %s678 = scalar_lea.vmem %s197, 656
        %v679 = vld [vmem:[%s678] sm:$0xff]
        %v680 = vld [vmem:[%s678 + $0x8] sm:$0xff]
        %683 = vrot.lane.b32.xlu0 %v679, 16
        %v684 = vpop.permute.xlu0 %683
        %685 = vrot.lane.b32.xlu0 %v680, 16
        %v686 = vpop.permute.xlu0 %685
        %689 = vst.msk [vmem:[#allocation2 + $0x80] sm:$0xff] %vm229, %v684
        %690 = vst.msk [vmem:[#allocation2 + $0x88] sm:$0xff] %vm229, %v686
        %s691 = scalar_lea.vmem %s197, 672
        %v692 = vld [vmem:[%s691] sm:$0xff]
        %v693 = vld [vmem:[%s691 + $0x8] sm:$0xff]
        %696 = vrot.lane.b32.xlu0 %v692, 32
        %v697 = vpop.permute.xlu0 %696
        %698 = vrot.lane.b32.xlu0 %v693, 32
        %v699 = vpop.permute.xlu0 %698
        %702 = vst.msk [vmem:[#allocation2 + $0x80] sm:$0xff] %vm243, %v697
        %703 = vst.msk [vmem:[#allocation2 + $0x88] sm:$0xff] %vm243, %v699
        %s704 = scalar_lea.vmem %s197, 688
        %v705 = vld [vmem:[%s704] sm:$0xff]
        %v706 = vld [vmem:[%s704 + $0x8] sm:$0xff]
        %709 = vrot.lane.b32.xlu0 %v705, 48
        %v710 = vpop.permute.xlu0 %709
        %711 = vrot.lane.b32.xlu0 %v706, 48
        %v712 = vpop.permute.xlu0 %711
        %715 = vst.msk [vmem:[#allocation2 + $0x80] sm:$0xff] %vm257, %v710
        %716 = vst.msk [vmem:[#allocation2 + $0x88] sm:$0xff] %vm257, %v712
        %s717 = scalar_lea.vmem %s197, 704
        %v718 = vld [vmem:[%s717] sm:$0xff]
        %v719 = vld [vmem:[%s717 + $0x8] sm:$0xff]
        %722 = vrot.lane.b32.xlu0 %v718, 64
        %v723 = vpop.permute.xlu0 %722
        %724 = vrot.lane.b32.xlu0 %v719, 64
        %v725 = vpop.permute.xlu0 %724
        %728 = vst.msk [vmem:[#allocation2 + $0x80] sm:$0xff] %vm271, %v723
        %729 = vst.msk [vmem:[#allocation2 + $0x88] sm:$0xff] %vm271, %v725
        %s730 = scalar_lea.vmem %s197, 720
        %v731 = vld [vmem:[%s730] sm:$0xff]
        %v732 = vld [vmem:[%s730 + $0x8] sm:$0xff]
        %733 = vst.msk [vmem:[#allocation2 + $0x90] sm:$0xff] %vm215, %v731
        %734 = vst.msk [vmem:[#allocation2 + $0x98] sm:$0xff] %vm215, %v732
        %s735 = scalar_lea.vmem %s197, 736
        %v736 = vld [vmem:[%s735] sm:$0xff]
        %v737 = vld [vmem:[%s735 + $0x8] sm:$0xff]
        %740 = vrot.lane.b32.xlu0 %v736, 16
        %v741 = vpop.permute.xlu0 %740
        %742 = vrot.lane.b32.xlu0 %v737, 16
        %v743 = vpop.permute.xlu0 %742
        %746 = vst.msk [vmem:[#allocation2 + $0x90] sm:$0xff] %vm229, %v741
        %747 = vst.msk [vmem:[#allocation2 + $0x98] sm:$0xff] %vm229, %v743
        %s748 = scalar_lea.vmem %s197, 752
        %v749 = vld [vmem:[%s748] sm:$0xff]
        %v750 = vld [vmem:[%s748 + $0x8] sm:$0xff]
        %753 = vrot.lane.b32.xlu0 %v749, 32
        %v754 = vpop.permute.xlu0 %753
        %755 = vrot.lane.b32.xlu0 %v750, 32
        %v756 = vpop.permute.xlu0 %755
        %759 = vst.msk [vmem:[#allocation2 + $0x90] sm:$0xff] %vm243, %v754
        %760 = vst.msk [vmem:[#allocation2 + $0x98] sm:$0xff] %vm243, %v756
        %s761 = scalar_lea.vmem %s197, 768
        %v762 = vld [vmem:[%s761] sm:$0xff]
        %v763 = vld [vmem:[%s761 + $0x8] sm:$0xff]
        %766 = vrot.lane.b32.xlu0 %v762, 48
        %v767 = vpop.permute.xlu0 %766
        %768 = vrot.lane.b32.xlu0 %v763, 48
        %v769 = vpop.permute.xlu0 %768
        %772 = vst.msk [vmem:[#allocation2 + $0x90] sm:$0xff] %vm257, %v767
        %773 = vst.msk [vmem:[#allocation2 + $0x98] sm:$0xff] %vm257, %v769
        %s774 = scalar_lea.vmem %s197, 784
        %v775 = vld [vmem:[%s774] sm:$0xff]
        %v776 = vld [vmem:[%s774 + $0x8] sm:$0xff]
        %779 = vrot.lane.b32.xlu0 %v775, 64
        %v780 = vpop.permute.xlu0 %779
        %781 = vrot.lane.b32.xlu0 %v776, 64
        %v782 = vpop.permute.xlu0 %781
        %785 = vst.msk [vmem:[#allocation2 + $0x90] sm:$0xff] %vm271, %v780
        %786 = vst.msk [vmem:[#allocation2 + $0x98] sm:$0xff] %vm271, %v782
        %v787 = vld [vmem:[#allocation2] sm:$0xff]
        %v788 = vld [vmem:[#allocation2 + $0x8] sm:$0xff]
        %v789 = vld [vmem:[#allocation2 + $0x10] sm:$0xff]
        %v790 = vld [vmem:[#allocation2 + $0x18] sm:$0xff]
        %v791 = vld [vmem:[#allocation2 + $0x20] sm:$0xff]
        %v792 = vld [vmem:[#allocation2 + $0x28] sm:$0xff]
        %v793 = vld [vmem:[#allocation2 + $0x30] sm:$0xff]
        %v794 = vld [vmem:[#allocation2 + $0x38] sm:$0xff]
        %v795 = vld [vmem:[#allocation2 + $0x40] sm:$0xff]
        %v796 = vld [vmem:[#allocation2 + $0x48] sm:$0xff]
        %v797 = vld [vmem:[#allocation2 + $0x50] sm:$0xff]
        %v798 = vld [vmem:[#allocation2 + $0x58] sm:$0xff]
        %v799 = vld [vmem:[#allocation2 + $0x60] sm:$0xff]
        %v800 = vld [vmem:[#allocation2 + $0x68] sm:$0xff]
        %v801 = vld [vmem:[#allocation2 + $0x70] sm:$0xff]
        %v802 = vld [vmem:[#allocation2 + $0x78] sm:$0xff]
        %v803 = vld [vmem:[#allocation2 + $0x80] sm:$0xff]
        %v804 = vld [vmem:[#allocation2 + $0x88] sm:$0xff]
        %v805 = vld [vmem:[#allocation2 + $0x90] sm:$0xff]
        %v806 = vld [vmem:[#allocation2 + $0x98] sm:$0xff]
        %v807 = vpack.c.bf16 %v787, %v787
        %v808 = vpack.c.bf16 %v788, %v788
        %v809 = vpack.c.bf16 %v789, %v789
        %v810 = vpack.c.bf16 %v790, %v790
        %v811 = vpack.c.bf16 %v791, %v791
        %v812 = vpack.c.bf16 %v792, %v792
        %v813 = vpack.c.bf16 %v793, %v793
        %v814 = vpack.c.bf16 %v794, %v794
        %v815 = vpack.c.bf16 %v795, %v795
        %v816 = vpack.c.bf16 %v796, %v796
        %v817 = vpack.c.bf16 %v797, %v797
        %v818 = vpack.c.bf16 %v798, %v798
        %v819 = vpack.c.bf16 %v799, %v799
        %v820 = vpack.c.bf16 %v800, %v800
        %v821 = vpack.c.bf16 %v801, %v801
        %v822 = vpack.c.bf16 %v802, %v802
        %v823 = vpack.c.bf16 %v803, %v803
        %v824 = vpack.c.bf16 %v804, %v804
        %v825 = vpack.c.bf16 %v805, %v805
        %v826 = vpack.c.bf16 %v806, %v806
        %v827 = vunpack.c.l.bf16 %v807
        %v828 = vunpack.c.l.bf16 %v808
        %v829 = vunpack.c.l.bf16 %v809
        %v830 = vunpack.c.l.bf16 %v810
        %v831 = vunpack.c.l.bf16 %v811
        %v832 = vunpack.c.l.bf16 %v812
        %v833 = vunpack.c.l.bf16 %v813
        %v834 = vunpack.c.l.bf16 %v814
        %v835 = vunpack.c.l.bf16 %v815
        %v836 = vunpack.c.l.bf16 %v816
        %v837 = vunpack.c.l.bf16 %v817
        %v838 = vunpack.c.l.bf16 %v818
        %v839 = vunpack.c.l.bf16 %v819
        %v840 = vunpack.c.l.bf16 %v820
        %v841 = vunpack.c.l.bf16 %v821
        %v842 = vunpack.c.l.bf16 %v822
        %v843 = vunpack.c.l.bf16 %v823
        %v844 = vunpack.c.l.bf16 %v824
        %v845 = vunpack.c.l.bf16 %v825
        %v846 = vunpack.c.l.bf16 %v826
        %v847 = vsub.f32 %v787, %v827
        %v848 = vsub.f32 %v788, %v828
        %v849 = vsub.f32 %v789, %v829
        %v850 = vsub.f32 %v790, %v830
        %v851 = vsub.f32 %v791, %v831
        %v852 = vsub.f32 %v792, %v832
        %v853 = vsub.f32 %v793, %v833
        %v854 = vsub.f32 %v794, %v834
        %v855 = vsub.f32 %v795, %v835
        %v856 = vsub.f32 %v796, %v836
        %v857 = vsub.f32 %v797, %v837
        %v858 = vsub.f32 %v798, %v838
        %v859 = vsub.f32 %v799, %v839
        %v860 = vsub.f32 %v800, %v840
        %v861 = vsub.f32 %v801, %v841
        %v862 = vsub.f32 %v802, %v842
        %v863 = vsub.f32 %v803, %v843
        %v864 = vsub.f32 %v804, %v844
        %v865 = vsub.f32 %v805, %v845
        %v866 = vsub.f32 %v806, %v846
        %v867 = vpack.c.bf16 %v847, %v847
        %v868 = vpack.c.bf16 %v848, %v848
        %v869 = vpack.c.bf16 %v849, %v849
        %v870 = vpack.c.bf16 %v850, %v850
        %v871 = vpack.c.bf16 %v851, %v851
        %v872 = vpack.c.bf16 %v852, %v852
        %v873 = vpack.c.bf16 %v853, %v853
        %v874 = vpack.c.bf16 %v854, %v854
        %v875 = vpack.c.bf16 %v855, %v855
        %v876 = vpack.c.bf16 %v856, %v856
        %v877 = vpack.c.bf16 %v857, %v857
        %v878 = vpack.c.bf16 %v858, %v858
        %v879 = vpack.c.bf16 %v859, %v859
        %v880 = vpack.c.bf16 %v860, %v860
        %v881 = vpack.c.bf16 %v861, %v861
        %v882 = vpack.c.bf16 %v862, %v862
        %v883 = vpack.c.bf16 %v863, %v863
        %v884 = vpack.c.bf16 %v864, %v864
        %v885 = vpack.c.bf16 %v865, %v865
        %v886 = vpack.c.bf16 %v866, %v866
        %v887 = vunpack.c.l.bf16 %v867
        %v888 = vunpack.c.l.bf16 %v868
        %v889 = vunpack.c.l.bf16 %v869
        %v890 = vunpack.c.l.bf16 %v870
        %v891 = vunpack.c.l.bf16 %v871
        %v892 = vunpack.c.l.bf16 %v872
        %v893 = vunpack.c.l.bf16 %v873
        %v894 = vunpack.c.l.bf16 %v874
        %v895 = vunpack.c.l.bf16 %v875
        %v896 = vunpack.c.l.bf16 %v876
        %v897 = vunpack.c.l.bf16 %v877
        %v898 = vunpack.c.l.bf16 %v878
        %v899 = vunpack.c.l.bf16 %v879
        %v900 = vunpack.c.l.bf16 %v880
        %v901 = vunpack.c.l.bf16 %v881
        %v902 = vunpack.c.l.bf16 %v882
        %v903 = vunpack.c.l.bf16 %v883
        %v904 = vunpack.c.l.bf16 %v884
        %v905 = vunpack.c.l.bf16 %v885
        %v906 = vunpack.c.l.bf16 %v886
        %v907 = vsub.f32 %v847, %v887
        %v908 = vsub.f32 %v848, %v888
        %v909 = vsub.f32 %v849, %v889
        %v910 = vsub.f32 %v850, %v890
        %v911 = vsub.f32 %v851, %v891
        %v912 = vsub.f32 %v852, %v892
        %v913 = vsub.f32 %v853, %v893
        %v914 = vsub.f32 %v854, %v894
        %v915 = vsub.f32 %v855, %v895
        %v916 = vsub.f32 %v856, %v896
        %v917 = vsub.f32 %v857, %v897
        %v918 = vsub.f32 %v858, %v898
        %v919 = vsub.f32 %v859, %v899
        %v920 = vsub.f32 %v860, %v900
        %v921 = vsub.f32 %v861, %v901
        %v922 = vsub.f32 %v862, %v902
        %v923 = vsub.f32 %v863, %v903
        %v924 = vsub.f32 %v864, %v904
        %v925 = vsub.f32 %v865, %v905
        %v926 = vsub.f32 %v866, %v906
        %v927 = vpack.c.bf16 %v908, %v907
        %v928 = vpack.c.bf16 %v910, %v909
        %v929 = vpack.c.bf16 %v912, %v911
        %v930 = vpack.c.bf16 %v914, %v913
        %v931 = vpack.c.bf16 %v916, %v915
        %v932 = vpack.c.bf16 %v918, %v917
        %v933 = vpack.c.bf16 %v920, %v919
        %v934 = vpack.c.bf16 %v922, %v921
        %v935 = vpack.c.bf16 %v924, %v923
        %v936 = vpack.c.bf16 %v926, %v925
        %v957 = vunpack.c.l.b16 %v867
        %v958 = vunpack.c.l.b16 %v868
        %v959 = vunpack.c.l.b16 %v869
        %v960 = vunpack.c.l.b16 %v870
        %v961 = vunpack.c.l.b16 %v871
        %v962 = vunpack.c.l.b16 %v872
        %v963 = vunpack.c.l.b16 %v873
        %v964 = vunpack.c.l.b16 %v874
        %v965 = vunpack.c.l.b16 %v875
        %v966 = vunpack.c.l.b16 %v876
        %v967 = vunpack.c.l.b16 %v877
        %v968 = vunpack.c.l.b16 %v878
        %v969 = vunpack.c.l.b16 %v879
        %v970 = vunpack.c.l.b16 %v880
        %v971 = vunpack.c.l.b16 %v881
        %v972 = vunpack.c.l.b16 %v882
        %v973 = vunpack.c.l.b16 %v883
        %v974 = vunpack.c.l.b16 %v884
        %v975 = vunpack.c.l.b16 %v885
        %v976 = vunpack.c.l.b16 %v886
        %v977 = vpack.c.b16 %v958, %v957
        %v978 = vpack.c.b16 %v960, %v959
        %v979 = vpack.c.b16 %v962, %v961
        %v980 = vpack.c.b16 %v964, %v963
        %v981 = vpack.c.b16 %v966, %v965
        %v982 = vpack.c.b16 %v968, %v967
        %v983 = vpack.c.b16 %v970, %v969
        %v984 = vpack.c.b16 %v972, %v971
        %v985 = vpack.c.b16 %v974, %v973
        %v986 = vpack.c.b16 %v976, %v975
        %v997 = vunpack.c.l.b16 %v203
        %v998 = vunpack.c.l.b16 %v204
        %v999 = vunpack.c.l.b16 %v205
        %v1000 = vunpack.c.l.b16 %v206
        %v1001 = vunpack.c.l.b16 %v207
        %v1002 = vunpack.c.l.b16 %v208
        %v1003 = vunpack.c.l.b16 %v209
        %v1004 = vunpack.c.l.b16 %v210
        %v1005 = vunpack.c.l.b16 %v211
        %v1006 = vunpack.c.l.b16 %v212
        %v1007 = vpack.c.b16 %v998, %v997
        %v1008 = vpack.c.b16 %v1000, %v999
        %v1009 = vpack.c.b16 %v1002, %v1001
        %v1010 = vpack.c.b16 %v1004, %v1003
        %v1011 = vpack.c.b16 %v1006, %v1005
        %vm1017 = vcmask 654336
        %v1019 = vsel %vm1017, %v977, 0
        %v1022 = vsel %vm1017, %v978, 0
        %v1025 = vsel %vm1017, %v979, 0
        %v1028 = vsel %vm1017, %v980, 0
        %v1031 = vsel %vm1017, %v981, 0
        %v1034 = vsel %vm1017, %v982, 0
        %v1037 = vsel %vm1017, %v983, 0
        %v1040 = vsel %vm1017, %v984, 0
        %v1043 = vsel %vm1017, %v985, 0
        %v1046 = vsel %vm1017, %v986, 0
        %1048 = vmatpush.bf16.msra.mxu0 0
        %1049 = vmatpush.bf16.msra.mxu0 0
        %1050 = vmatpush.bf16.msra.mxu0 0
        %1051 = vmatpush.bf16.msra.mxu0 %v1011
        %1052 = vmatpush.bf16.msra.mxu0 %v1010
        %1053 = vmatpush.bf16.msra.mxu0 %v1009
        %1054 = vmatpush.bf16.msra.mxu0 %v1008
        %1055 = vmatpush.bf16.msra.mxu0 %v1007
        %1056 = vmatmul.bf16.gmra.mxu0 %v1019
        %v1057 = vpop.f32.mrf.mxu0
        %v1058 = vadd.f32 0.0, %v1057
        %v1059 = vpop.f32.mrf.mxu0
        %v1060 = vadd.f32 0.0, %v1059
        %1061 = vmatmul.bf16.gmra.mxu0 %v1022
        %v1062 = vpop.f32.mrf.mxu0
        %v1063 = vadd.f32 0.0, %v1062
        %v1064 = vpop.f32.mrf.mxu0
        %v1065 = vadd.f32 0.0, %v1064
        %1066 = vmatmul.bf16.gmra.mxu0 %v1025
        %v1067 = vpop.f32.mrf.mxu0
        %v1068 = vadd.f32 0.0, %v1067
        %v1069 = vpop.f32.mrf.mxu0
        %v1070 = vadd.f32 0.0, %v1069
        %1071 = vmatmul.bf16.gmra.mxu0 %v1028
        %v1072 = vpop.f32.mrf.mxu0
        %v1073 = vadd.f32 0.0, %v1072
        %v1074 = vpop.f32.mrf.mxu0
        %v1075 = vadd.f32 0.0, %v1074
        %1076 = vmatmul.bf16.gmra.mxu0 %v1031
        %v1077 = vpop.f32.mrf.mxu0
        %v1078 = vadd.f32 0.0, %v1077
        %v1079 = vpop.f32.mrf.mxu0
        %v1080 = vadd.f32 0.0, %v1079
        %1081 = vmatmul.bf16.gmra.mxu0 %v1034
        %v1082 = vpop.f32.mrf.mxu0
        %v1083 = vadd.f32 0.0, %v1082
        %v1084 = vpop.f32.mrf.mxu0
        %v1085 = vadd.f32 0.0, %v1084
        %1086 = vmatmul.bf16.gmra.mxu0 %v1037
        %v1087 = vpop.f32.mrf.mxu0
        %v1088 = vadd.f32 0.0, %v1087
        %v1089 = vpop.f32.mrf.mxu0
        %v1090 = vadd.f32 0.0, %v1089
        %1091 = vmatmul.bf16.gmra.mxu0 %v1040
        %v1092 = vpop.f32.mrf.mxu0
        %v1093 = vadd.f32 0.0, %v1092
        %v1094 = vpop.f32.mrf.mxu0
        %v1095 = vadd.f32 0.0, %v1094
        %1096 = vmatmul.bf16.gmra.mxu0 %v1043
        %v1097 = vpop.f32.mrf.mxu0
        %v1098 = vadd.f32 0.0, %v1097
        %v1099 = vpop.f32.mrf.mxu0
        %v1100 = vadd.f32 0.0, %v1099
        %1101 = vmatmul.bf16.gmra.mxu0 %v1046
        %v1102 = vpop.f32.mrf.mxu0
        %v1103 = vadd.f32 0.0, %v1102
        %v1104 = vpop.f32.mrf.mxu0
        %v1105 = vadd.f32 0.0, %v1104
        %1106 = vdwg.mxu0
        %v1127 = vunpack.c.l.b16 %v807
        %v1128 = vunpack.c.l.b16 %v808
        %v1129 = vunpack.c.l.b16 %v809
        %v1130 = vunpack.c.l.b16 %v810
        %v1131 = vunpack.c.l.b16 %v811
        %v1132 = vunpack.c.l.b16 %v812
        %v1133 = vunpack.c.l.b16 %v813
        %v1134 = vunpack.c.l.b16 %v814
        %v1135 = vunpack.c.l.b16 %v815
        %v1136 = vunpack.c.l.b16 %v816
        %v1137 = vunpack.c.l.b16 %v817
        %v1138 = vunpack.c.l.b16 %v818
        %v1139 = vunpack.c.l.b16 %v819
        %v1140 = vunpack.c.l.b16 %v820
        %v1141 = vunpack.c.l.b16 %v821
        %v1142 = vunpack.c.l.b16 %v822
        %v1143 = vunpack.c.l.b16 %v823
        %v1144 = vunpack.c.l.b16 %v824
        %v1145 = vunpack.c.l.b16 %v825
        %v1146 = vunpack.c.l.b16 %v826
        %v1147 = vpack.c.b16 %v1128, %v1127
        %v1148 = vpack.c.b16 %v1130, %v1129
        %v1149 = vpack.c.b16 %v1132, %v1131
        %v1150 = vpack.c.b16 %v1134, %v1133
        %v1151 = vpack.c.b16 %v1136, %v1135
        %v1152 = vpack.c.b16 %v1138, %v1137
        %v1153 = vpack.c.b16 %v1140, %v1139
        %v1154 = vpack.c.b16 %v1142, %v1141
        %v1155 = vpack.c.b16 %v1144, %v1143
        %v1156 = vpack.c.b16 %v1146, %v1145
        %v1158 = vsel %vm1017, %v1147, 0
        %v1161 = vsel %vm1017, %v1148, 0
        %v1164 = vsel %vm1017, %v1149, 0
        %v1167 = vsel %vm1017, %v1150, 0
        %v1170 = vsel %vm1017, %v1151, 0
        %v1173 = vsel %vm1017, %v1152, 0
        %v1176 = vsel %vm1017, %v1153, 0
        %v1179 = vsel %vm1017, %v1154, 0
        %v1182 = vsel %vm1017, %v1155, 0
        %v1185 = vsel %vm1017, %v1156, 0
        %1187 = vmatpush.bf16.msra.mxu0 0
        %1188 = vmatpush.bf16.msra.mxu0 0
        %1189 = vmatpush.bf16.msra.mxu0 0
        %1190 = vmatpush.bf16.msra.mxu0 %v1011
        %1191 = vmatpush.bf16.msra.mxu0 %v1010
        %1192 = vmatpush.bf16.msra.mxu0 %v1009
        %1193 = vmatpush.bf16.msra.mxu0 %v1008
        %1194 = vmatpush.bf16.msra.mxu0 %v1007
        %1195 = vmatmul.bf16.gmra.mxu0 %v1158
        %v1196 = vpop.f32.mrf.mxu0
        %v1197 = vadd.f32 %v1058, %v1196
        %v1198 = vpop.f32.mrf.mxu0
        %v1199 = vadd.f32 %v1060, %v1198
        %1200 = vmatmul.bf16.gmra.mxu0 %v1161
        %v1201 = vpop.f32.mrf.mxu0
        %v1202 = vadd.f32 %v1063, %v1201
        %v1203 = vpop.f32.mrf.mxu0
        %v1204 = vadd.f32 %v1065, %v1203
        %1205 = vmatmul.bf16.gmra.mxu0 %v1164
        %v1206 = vpop.f32.mrf.mxu0
        %v1207 = vadd.f32 %v1068, %v1206
        %v1208 = vpop.f32.mrf.mxu0
        %v1209 = vadd.f32 %v1070, %v1208
        %1210 = vmatmul.bf16.gmra.mxu0 %v1167
        %v1211 = vpop.f32.mrf.mxu0
        %v1212 = vadd.f32 %v1073, %v1211
        %v1213 = vpop.f32.mrf.mxu0
        %v1214 = vadd.f32 %v1075, %v1213
        %1215 = vmatmul.bf16.gmra.mxu0 %v1170
        %v1216 = vpop.f32.mrf.mxu0
        %v1217 = vadd.f32 %v1078, %v1216
        %v1218 = vpop.f32.mrf.mxu0
        %v1219 = vadd.f32 %v1080, %v1218
        %1220 = vmatmul.bf16.gmra.mxu0 %v1173
        %v1221 = vpop.f32.mrf.mxu0
        %v1222 = vadd.f32 %v1083, %v1221
        %v1223 = vpop.f32.mrf.mxu0
        %v1224 = vadd.f32 %v1085, %v1223
        %1225 = vmatmul.bf16.gmra.mxu0 %v1176
        %v1226 = vpop.f32.mrf.mxu0
        %v1227 = vadd.f32 %v1088, %v1226
        %v1228 = vpop.f32.mrf.mxu0
        %v1229 = vadd.f32 %v1090, %v1228
        %1230 = vmatmul.bf16.gmra.mxu0 %v1179
        %v1231 = vpop.f32.mrf.mxu0
        %v1232 = vadd.f32 %v1093, %v1231
        %v1233 = vpop.f32.mrf.mxu0
        %v1234 = vadd.f32 %v1095, %v1233
        %1235 = vmatmul.bf16.gmra.mxu0 %v1182
        %v1236 = vpop.f32.mrf.mxu0
        %v1237 = vadd.f32 %v1098, %v1236
        %v1238 = vpop.f32.mrf.mxu0
        %v1239 = vadd.f32 %v1100, %v1238
        %1240 = vmatmul.bf16.gmra.mxu0 %v1185
        %v1241 = vpop.f32.mrf.mxu0
        %v1242 = vadd.f32 %v1103, %v1241
        %v1243 = vpop.f32.mrf.mxu0
        %v1244 = vadd.f32 %v1105, %v1243
        %1245 = vdwg.mxu0
        %v1247 = vsel %vm1017, %v927, 0
        %v1250 = vsel %vm1017, %v928, 0
        %v1253 = vsel %vm1017, %v929, 0
        %v1256 = vsel %vm1017, %v930, 0
        %v1259 = vsel %vm1017, %v931, 0
        %v1262 = vsel %vm1017, %v932, 0
        %v1265 = vsel %vm1017, %v933, 0
        %v1268 = vsel %vm1017, %v934, 0
        %v1271 = vsel %vm1017, %v935, 0
        %v1274 = vsel %vm1017, %v936, 0
        %1276 = vmatpush.bf16.msra.mxu0 0
        %1277 = vmatpush.bf16.msra.mxu0 0
        %1278 = vmatpush.bf16.msra.mxu0 0
        %1279 = vmatpush.bf16.msra.mxu0 %v1011
        %1280 = vmatpush.bf16.msra.mxu0 %v1010
        %1281 = vmatpush.bf16.msra.mxu0 %v1009
        %1282 = vmatpush.bf16.msra.mxu0 %v1008
        %1283 = vmatpush.bf16.msra.mxu0 %v1007
        %1284 = vmatmul.bf16.gmra.mxu0 %v1247
        %v1285 = vpop.f32.mrf.mxu0
        %v1286 = vadd.f32 0.0, %v1285
        %v1287 = vpop.f32.mrf.mxu0
        %v1288 = vadd.f32 0.0, %v1287
        %1289 = vmatmul.bf16.gmra.mxu0 %v1250
        %v1290 = vpop.f32.mrf.mxu0
        %v1291 = vadd.f32 0.0, %v1290
        %v1292 = vpop.f32.mrf.mxu0
        %v1293 = vadd.f32 0.0, %v1292
        %1294 = vmatmul.bf16.gmra.mxu0 %v1253
        %v1295 = vpop.f32.mrf.mxu0
        %v1296 = vadd.f32 0.0, %v1295
        %v1297 = vpop.f32.mrf.mxu0
        %v1298 = vadd.f32 0.0, %v1297
        %1299 = vmatmul.bf16.gmra.mxu0 %v1256
        %v1300 = vpop.f32.mrf.mxu0
        %v1301 = vadd.f32 0.0, %v1300
        %v1302 = vpop.f32.mrf.mxu0
        %v1303 = vadd.f32 0.0, %v1302
        %1304 = vmatmul.bf16.gmra.mxu0 %v1259
        %v1305 = vpop.f32.mrf.mxu0
        %v1306 = vadd.f32 0.0, %v1305
        %v1307 = vpop.f32.mrf.mxu0
        %v1308 = vadd.f32 0.0, %v1307
        %1309 = vmatmul.bf16.gmra.mxu0 %v1262
        %v1310 = vpop.f32.mrf.mxu0
        %v1311 = vadd.f32 0.0, %v1310
        %v1312 = vpop.f32.mrf.mxu0
        %v1313 = vadd.f32 0.0, %v1312
        %1314 = vmatmul.bf16.gmra.mxu0 %v1265
        %v1315 = vpop.f32.mrf.mxu0
        %v1316 = vadd.f32 0.0, %v1315
        %v1317 = vpop.f32.mrf.mxu0
        %v1318 = vadd.f32 0.0, %v1317
        %1319 = vmatmul.bf16.gmra.mxu0 %v1268
        %v1320 = vpop.f32.mrf.mxu0
        %v1321 = vadd.f32 0.0, %v1320
        %v1322 = vpop.f32.mrf.mxu0
        %v1323 = vadd.f32 0.0, %v1322
        %1324 = vmatmul.bf16.gmra.mxu0 %v1271
        %v1325 = vpop.f32.mrf.mxu0
        %v1326 = vadd.f32 0.0, %v1325
        %v1327 = vpop.f32.mrf.mxu0
        %v1328 = vadd.f32 0.0, %v1327
        %1329 = vmatmul.bf16.gmra.mxu0 %v1274
        %v1330 = vpop.f32.mrf.mxu0
        %v1331 = vadd.f32 0.0, %v1330
        %v1332 = vpop.f32.mrf.mxu0
        %v1333 = vadd.f32 0.0, %v1332
        %1334 = vdwg.mxu0
        %v1335 = vadd.f32 %v1197, %v1286
        %v1336 = vadd.f32 %v1199, %v1288
        %v1337 = vadd.f32 %v1202, %v1291
        %v1338 = vadd.f32 %v1204, %v1293
        %v1339 = vadd.f32 %v1207, %v1296
        %v1340 = vadd.f32 %v1209, %v1298
        %v1341 = vadd.f32 %v1212, %v1301
        %v1342 = vadd.f32 %v1214, %v1303
        %v1343 = vadd.f32 %v1217, %v1306
        %v1344 = vadd.f32 %v1219, %v1308
        %v1345 = vadd.f32 %v1222, %v1311
        %v1346 = vadd.f32 %v1224, %v1313
        %v1347 = vadd.f32 %v1227, %v1316
        %v1348 = vadd.f32 %v1229, %v1318
        %v1349 = vadd.f32 %v1232, %v1321
        %v1350 = vadd.f32 %v1234, %v1323
        %v1351 = vadd.f32 %v1237, %v1326
        %v1352 = vadd.f32 %v1239, %v1328
        %v1353 = vadd.f32 %v1242, %v1331
        %v1354 = vadd.f32 %v1244, %v1333
        %1355 = vst.msk [vmem:[%s183] sm:$0xff] %vm1017, %v1335
        %1356 = vst.msk [vmem:[%s183 + $0x20] sm:$0xff] %vm1017, %v1336
        %1359 = vrot.lane.b32.xlu0 %v1337, 80
        %v1360 = vpop.permute.xlu0 %1359
        %1361 = vrot.lane.b32.xlu0 %v1338, 80
        %v1362 = vpop.permute.xlu0 %1361
        %vm1365 = vcmask 1048192
        %1366 = vst.msk [vmem:[%s183] sm:$0xff] %vm1365, %v1360
        %vm1367 = vcmask 261120
        %1368 = vst.msk [vmem:[%s183 + $0x8] sm:$0xff] %vm1367, %v1360
        %1369 = vst.msk [vmem:[%s183 + $0x20] sm:$0xff] %vm1365, %v1362
        %1370 = vst.msk [vmem:[%s183 + $0x28] sm:$0xff] %vm1367, %v1362
        %1373 = vrot.lane.b32.xlu0 %v1339, 32
        %v1374 = vpop.permute.xlu0 %1373
        %1375 = vrot.lane.b32.xlu0 %v1340, 32
        %v1376 = vpop.permute.xlu0 %1375
        %vm1379 = vcmask 916736
        %1380 = vst.msk [vmem:[%s183 + $0x8] sm:$0xff] %vm1379, %v1374
        %1381 = vst.msk [vmem:[%s183 + $0x28] sm:$0xff] %vm1379, %v1376
        %1384 = vrot.lane.b32.xlu0 %v1341, 112
        %v1385 = vpop.permute.xlu0 %1384
        %1386 = vrot.lane.b32.xlu0 %v1342, 112
        %v1387 = vpop.permute.xlu0 %1386
        %vm1390 = vcmask 1048448
        %1391 = vst.msk [vmem:[%s183 + $0x8] sm:$0xff] %vm1390, %v1385
        %vm1392 = vcmask 523264
        %1393 = vst.msk [vmem:[%s183 + $0x10] sm:$0xff] %vm1392, %v1385
        %1394 = vst.msk [vmem:[%s183 + $0x28] sm:$0xff] %vm1390, %v1387
        %1395 = vst.msk [vmem:[%s183 + $0x30] sm:$0xff] %vm1392, %v1387
        %1398 = vrot.lane.b32.xlu0 %v1343, 64
        %v1399 = vpop.permute.xlu0 %1398
        %1400 = vrot.lane.b32.xlu0 %v1344, 64
        %v1401 = vpop.permute.xlu0 %1400
        %vm1404 = vcmask 1048064
        %1405 = vst.msk [vmem:[%s183 + $0x10] sm:$0xff] %vm1404, %v1399
        %1406 = vst.msk [vmem:[%s183 + $0x18] sm:$0xff] %vm215, %v1399
        %1407 = vst.msk [vmem:[%s183 + $0x30] sm:$0xff] %vm1404, %v1401
        %1408 = vst.msk [vmem:[%s183 + $0x38] sm:$0xff] %vm215, %v1401
        %s1409 = scalar_lea.vmem %s183, 64 [#allocation3]
        %1410 = vst.msk [vmem:[%s1409] sm:$0xff] %vm1017, %v1345
        %1411 = vst.msk [vmem:[%s1409 + $0x20] sm:$0xff] %vm1017, %v1346
        %1414 = vrot.lane.b32.xlu0 %v1347, 80
        %v1415 = vpop.permute.xlu0 %1414
        %1416 = vrot.lane.b32.xlu0 %v1348, 80
        %v1417 = vpop.permute.xlu0 %1416
        %1420 = vst.msk [vmem:[%s1409] sm:$0xff] %vm1365, %v1415
        %1421 = vst.msk [vmem:[%s1409 + $0x8] sm:$0xff] %vm1367, %v1415
        %1422 = vst.msk [vmem:[%s1409 + $0x20] sm:$0xff] %vm1365, %v1417
        %1423 = vst.msk [vmem:[%s1409 + $0x28] sm:$0xff] %vm1367, %v1417
        %1426 = vrot.lane.b32.xlu0 %v1349, 32
        %v1427 = vpop.permute.xlu0 %1426
        %1428 = vrot.lane.b32.xlu0 %v1350, 32
        %v1429 = vpop.permute.xlu0 %1428
        %1432 = vst.msk [vmem:[%s1409 + $0x8] sm:$0xff] %vm1379, %v1427
        %1433 = vst.msk [vmem:[%s1409 + $0x28] sm:$0xff] %vm1379, %v1429
        %1436 = vrot.lane.b32.xlu0 %v1351, 112
        %v1437 = vpop.permute.xlu0 %1436
        %1438 = vrot.lane.b32.xlu0 %v1352, 112
        %v1439 = vpop.permute.xlu0 %1438
        %1442 = vst.msk [vmem:[%s1409 + $0x8] sm:$0xff] %vm1390, %v1437
        %1443 = vst.msk [vmem:[%s1409 + $0x10] sm:$0xff] %vm1392, %v1437
        %1444 = vst.msk [vmem:[%s1409 + $0x28] sm:$0xff] %vm1390, %v1439
        %1445 = vst.msk [vmem:[%s1409 + $0x30] sm:$0xff] %vm1392, %v1439
        %1448 = vrot.lane.b32.xlu0 %v1353, 64
        %v1449 = vpop.permute.xlu0 %1448
        %1450 = vrot.lane.b32.xlu0 %v1354, 64
        %v1451 = vpop.permute.xlu0 %1450
        %1454 = vst.msk [vmem:[%s1409 + $0x10] sm:$0xff] %vm1404, %v1449
        %1455 = vst.msk [vmem:[%s1409 + $0x18] sm:$0xff] %vm215, %v1449
        %1456 = vst.msk [vmem:[%s1409 + $0x30] sm:$0xff] %vm1404, %v1451
        %1457 = vst.msk [vmem:[%s1409 + $0x38] sm:$0xff] %vm215, %v1451
        %s1458 = sand.u32 %s98, 1
        %s1459 = scalar_lea.sflag [#allocation4], %s1458
        %s1460 = sand.u32 %s98, 1
        %s1461 = smul.addr %s1460, 128
        %s1462 = scalar_lea.vmem [#allocation3], %s1461
        // Predicated region
        $region29: #{tpu_custom_call.1} parent=27 // pred_check
          %p1463 = pneg %p108
        $region30: #{tpu_custom_call.1} parent=27 // pred_check_branch
          %1465 = sbr.rel (%p1463) target = $region32
        $region31: #{tpu_custom_call.1} parent=27 // pred_region
          %s1466 = smul.u32 2, %s22
          %s1467 = smul.u32 2, %s23
          %1469 = vsyncadd %s1459, 0
          %s1470 = smul.addr %s1467, 4
          %s1471 = smul.addr %s1466, 8
          %s1472 = sadd.s32 %s1470, %s1471
          %s1473 = smul.addr %s21, 16
          %s1474 = sadd.s32 %s1472, %s1473
          %s1475 = smul.addr %s1474, 8
          %s1476 = scalar_lea.hbm %s2, %s1475
          %s1477 = sshll.u32 %s1462, 4
          %s1478 = int_to_ptr.vmem [resolvable:$true] %s1477
          %s1479 = sshll.u32 %s1476, 4
          %s1480 = int_to_ptr.hbm [resolvable:$true] %s1479
          %1485 = dma.vmem_to_hbm [thread:$0]  %s1478, 2048, %s1480, %s1459, 512, 512, 32
        $region32: #{tpu_custom_call.1} parent=27 // pred_fallthru
          _
      $region28: #{tpu_custom_call.1} parent=5 // pred_fallthru
        _
      %p1486 = scmp.le.s32.totalorder 2, %s11
      // Predicated region
      $region33: #{tpu_custom_call.1} parent=5 // pred_check
        %p1487 = pneg %p1486
      $region34: #{tpu_custom_call.1} parent=5 // pred_check_branch
        %1489 = sbr.rel (%p1487) target = $region36
      $region35: #{tpu_custom_call.1} parent=5 // pred_region
        %s1490 = ssub.s32 %s11, 2
        // Predicated region
        $region37: #{tpu_custom_call.1} parent=35 // pred_check
          %p1491 = pneg %p114
        $region38: #{tpu_custom_call.1} parent=35 // pred_check_branch
          %1493 = sbr.rel (%p1491) target = $region40
        $region39: #{tpu_custom_call.1} parent=35 // pred_region
          %s1494 = sand.u32 %s99, 1
          %s1495 = scalar_lea.sflag [#allocation4], %s1494
          %s1496 = sand.u32 %s99, 1
          %s1497 = smul.addr %s1496, 128
          %s1498 = scalar_lea.vmem [#allocation3], %s1497
          %1500 = dma.done %s1495, 2048
        $region40: #{tpu_custom_call.1} parent=35 // pred_fallthru
          _
      $region36: #{tpu_custom_call.1} parent=5 // pred_fallthru
        _
    $region6: #{tpu_custom_call.1} parent=1 // loop_footer
      %s15 = sadd.s32 1, %s11
    $region7: #{tpu_custom_call.1} parent=1 // loop_footer_branch
      %10 = sbr.rel target = $region3
    $region8: #{tpu_custom_call.1} parent=1 // loop_exit
      _
    %1501 = vsyncpa [#allocation4], 1
    %s1502 = scalar_lea.sflag [#allocation4], 1
    %1503 = vsyncpa %s1502, 1

</llo_original>
